<compile_context>
chip_gen: v6e
topology: v6e:2x2x1
jax: 0.10.0
libtpu: 0.0.40
codegen_flags: <defaults>
</compile_context>

<pallas_src>
import jax
import jax.numpy as jnp
from jax.experimental import pallas as pl
from jax.experimental.pallas import tpu as pltpu

C_IN = 36
C_OUT = 864


def _conv1x1_sigmoid_kernel(x_ref, w_ref, b_ref, o_ref):
    # x_ref: [C_in, TM], w_ref: [C_out, C_in], b_ref: [C_out, 1], o_ref: [C_out, TM]
    y = jnp.dot(w_ref[...], x_ref[...], preferred_element_type=jnp.float32)
    y = y + b_ref[...]                       # broadcast over the lane (HW) axis
    o_ref[...] = jax.nn.sigmoid(y).astype(o_ref.dtype)


def _pick_m_tile(hw):
    # Lane-dense tile along the flattened spatial axis. Either the full extent
    # (exempt from the 128-divisibility rule) or a multiple of 128 small enough
    # that the f32 [C_OUT, TM] output tile double-buffered stays well under the
    # v5e 16 MiB scoped-VMEM default (TM=512 -> ~1.7 MiB per output buffer).
    if hw <= 512:
        return hw
    for tm in (512, 384, 256, 128):
        if hw % tm == 0:
            return tm
    return 128  # ragged final block handled by Pallas masking


def conv1x1_sigmoid(x_nchw, weight, bias):
    """1x1 Conv2d(C_in -> C_out) + Sigmoid. NCHW in, NCHW out.

    x_nchw: [N, C_in, H, W], weight: [C_out, C_in, 1, 1], bias: [C_out].
    """
    N, C_in, H, W = x_nchw.shape
    C_out = weight.shape[0]
    HW = H * W

    # Pure reshapes (no data movement) -- channel-first matmul layout.
    x3d = x_nchw.reshape(N, C_in, HW)
    w2d = weight.reshape(C_out, C_in)
    b2d = bias.reshape(C_out, 1)

    TM = _pick_m_tile(HW)
    grid = (N, pl.cdiv(HW, TM))

    out3d = pl.pallas_call(
        _conv1x1_sigmoid_kernel,
        out_shape=jax.ShapeDtypeStruct((N, C_out, HW), x_nchw.dtype),
        grid=grid,
        in_specs=[
            # Activation: batch element squeezed out, HW tiled on the lane axis.
            pl.BlockSpec((None, C_in, TM), lambda n, m: (n, 0, m)),
            # Weight / bias: constant block index -> resident in VMEM.
            pl.BlockSpec((C_out, C_in), lambda n, m: (0, 0)),
            pl.BlockSpec((C_out, 1), lambda n, m: (0, 0)),
        ],
        out_specs=pl.BlockSpec((None, C_out, TM), lambda n, m: (n, 0, m)),
        compiler_params=pltpu.CompilerParams(
            dimension_semantics=("parallel", "parallel")),
    )(x3d, w2d, b2d)

    return out3d.reshape(N, C_out, H, W)


conv1x1_sigmoid_jit = jax.jit(conv1x1_sigmoid)


def init_params(key, c_in=C_IN, c_out=C_OUT):
    # Deterministic init mimicking PyTorch Conv2d default (uniform +/- 1/sqrt(fan_in)).
    kw, kb = jax.random.split(key)
    bound = 1.0 / (c_in ** 0.5)
    weight = jax.random.uniform(kw, (c_out, c_in, 1, 1), jnp.float32, -bound, bound)
    bias = jax.random.uniform(kb, (c_out,), jnp.float32, -bound, bound)
    return weight, bias


def _reference(x, weight, bias):
    c_out, c_in = weight.shape[0], weight.shape[1]
    return jax.nn.sigmoid(
        jnp.einsum("nchw,oc->nohw", x, weight.reshape(c_out, c_in))
        + bias[None, :, None, None]
    )


if __name__ == "__main__":
    key = jax.random.PRNGKey(0)
    k_param, k_spec, k_big = jax.random.split(key, 3)
    weight, bias = init_params(k_param)

    # 1) Exact spec shape from the PyTorch module: x283 = [1, 36, 1, 1].
    x_spec = jax.random.normal(k_spec, (1, C_IN, 1, 1), jnp.float32)
    out_spec = jax.block_until_ready(conv1x1_sigmoid_jit(x_spec, weight, bias))
    assert out_spec.shape == (1, C_OUT, 1, 1)
    assert jnp.allclose(out_spec, _reference(x_spec, weight, bias), atol=1e-5, rtol=1e-5)

    # 2) Larger shape to exercise the (N, HW-tile) grid and lane-dense tiling.
    x_big = jax.random.normal(k_big, (2, C_IN, 16, 16), jnp.float32)
    out_big = jax.block_until_ready(conv1x1_sigmoid_jit(x_big, weight, bias))
    assert out_big.shape == (2, C_OUT, 16, 16)
    assert jnp.allclose(out_big, _reference(x_big, weight, bias), atol=1e-5, rtol=1e-5)

    print("KERNEL_OK")
</pallas_src>

<mosaic_0001>
module attributes {stable_mosaic.version = 11 : i64} {
  func.func @_conv1x1_sigmoid_kernel(%arg0: i32, %arg1: i32, %arg2: memref<1x36x1xf32, #tpu.memory_space<vmem>>, %arg3: memref<864x36xf32, #tpu.memory_space<vmem>>, %arg4: memref<864x1xf32, #tpu.memory_space<vmem>>, %arg5: memref<1x864x1xf32, #tpu.memory_space<vmem>>) attributes {dimension_semantics = [#tpu.dimension_semantics<parallel>, #tpu.dimension_semantics<parallel>], iteration_bounds = array<i64: 1, 1>, scalar_prefetch = 0 : i64, scratch_operands = 0 : i64, tpu.core_type = #tpu.core_type<tc>, window_params = [{transform_indices = @transform_0, window_bounds = array<i64: 1, 36, 1>}, {pipeline_mode = #tpu.pipeline_mode<synchronous>, transform_indices = @transform_1, window_bounds = array<i64: 864, 36>}, {pipeline_mode = #tpu.pipeline_mode<synchronous>, transform_indices = @transform_2, window_bounds = array<i64: 864, 1>}, {transform_indices = @transform_3, window_bounds = array<i64: 1, 864, 1>}]} {
    %c0 = arith.constant 0 : index
    %c0_0 = arith.constant 0 : index
    %0 = vector.load %arg3[%c0, %c0_0] : memref<864x36xf32, #tpu.memory_space<vmem>>, vector<864x36xf32>
    %c0_1 = arith.constant 0 : index
    %c0_2 = arith.constant 0 : index
    %c0_3 = arith.constant 0 : index
    %1 = vector.load %arg2[%c0_1, %c0_2, %c0_3] : memref<1x36x1xf32, #tpu.memory_space<vmem>>, vector<1x36x1xf32>
    %2 = vector.shape_cast %1 : vector<1x36x1xf32> to vector<36x1xf32>
    %cst = arith.constant dense<0.000000e+00> : vector<864x1xf32>
    %3 = tpu.matmul %0, %2, %cst {dimension_numbers = #tpu.dot_dimension_numbers<[1], [0], [0], [1], [0, 0, 1, 1], [], []>} : vector<864x36xf32>, vector<36x1xf32>, vector<864x1xf32> -> vector<864x1xf32>
    %c0_4 = arith.constant 0 : index
    %c0_5 = arith.constant 0 : index
    %4 = vector.load %arg4[%c0_4, %c0_5] : memref<864x1xf32, #tpu.memory_space<vmem>>, vector<864x1xf32>
    %5 = arith.addf %3, %4 : vector<864x1xf32>
    %6 = arith.negf %5 : vector<864x1xf32>
    %7 = math.exp %6 : vector<864x1xf32>
    %cst_6 = arith.constant 1.000000e+00 : f32
    %8 = vector.broadcast %cst_6 : f32 to vector<864x1xf32>
    %9 = arith.addf %8, %7 : vector<864x1xf32>
    %10 = arith.divf %8, %9 : vector<864x1xf32>
    %c0_7 = arith.constant 0 : index
    %c0_8 = arith.constant 0 : index
    %c0_9 = arith.constant 0 : index
    %11 = vector.load %arg5[%c0_7, %c0_8, %c0_9] : memref<1x864x1xf32, #tpu.memory_space<vmem>>, vector<1x864x1xf32>
    %12 = vector.shape_cast %11 : vector<1x864x1xf32> to vector<864x1xf32>
    %13 = vector.shape_cast %10 : vector<864x1xf32> to vector<1x864x1xf32>
    tpu.vector_store %arg5[%c0_7, %c0_8, %c0_9], %13 {strides = array<i32>} : memref<1x864x1xf32, #tpu.memory_space<vmem>>, vector<1x864x1xf32>,
    return
  }
  func.func @transform_0(%arg0: i32, %arg1: i32) -> (i32, i32, i32) {
    %c0_i32 = arith.constant 0 : i32
    %c0_i32_0 = arith.constant 0 : i32
    return %arg0, %c0_i32, %arg1 : i32, i32, i32
  }
  func.func @transform_1(%arg0: i32, %arg1: i32) -> (i32, i32) {
    %c0_i32 = arith.constant 0 : i32
    %c0_i32_0 = arith.constant 0 : i32
    %c0_i32_1 = arith.constant 0 : i32
    return %c0_i32, %c0_i32_0 : i32, i32
  }
  func.func @transform_2(%arg0: i32, %arg1: i32) -> (i32, i32) {
    %c0_i32 = arith.constant 0 : i32
    %c0_i32_0 = arith.constant 0 : i32
    %c0_i32_1 = arith.constant 0 : i32
    return %c0_i32, %c0_i32_0 : i32, i32
  }
  func.func @transform_3(%arg0: i32, %arg1: i32) -> (i32, i32, i32) {
    %c0_i32 = arith.constant 0 : i32
    %c0_i32_0 = arith.constant 0 : i32
    return %arg0, %c0_i32, %arg1 : i32, i32, i32
  }
}

</mosaic_0001>

<llo_original>
// kernel: conv1x1_sigmoid.1
$region0: #{conv1x1_sigmoid.1}
  #allocation0 [shape = 'u32[]', space=smem, size = 0x4, offset = 0x4, fixed_abs, tag = 'smem constant byte address 0x4 - core index']
  #allocation1 [shape = 'u32[144,128]{1,0:T(1,128)}', space=vmem, size = 0x12000, scoped, tag = 'internal scratch']
  %s0 = inlined_call_operand.vmem [shape: f32[1,36,1], index: 0, kind: input, shape index: {}]
  %s1 = inlined_call_operand.vmem [shape: f32[864,36], index: 1, kind: input, shape index: {}]
  %s2 = inlined_call_operand.vmem [shape: f32[864,1], index: 2, kind: input, shape index: {}]
  %s3 = inlined_call_operand.vmem [shape: f32[1,864,1], index: 3, kind: output, shape index: {}]
  %s4 = sld [smem:[#allocation0]]
  $region22: #{conv1x1_sigmoid.1} parent=0
    _
  %s6 = ssub.s32 1, %s4
  %s7 = scalar_select 0, %s6, %s4
  // Predicated region
  $region2: #{conv1x1_sigmoid.1} parent=0 // pred_check
    _
  $region3: #{conv1x1_sigmoid.1} parent=0 // pred_check_branch
    %9 = sbr.rel (0) target = $region5
  $region4: #{conv1x1_sigmoid.1} parent=0 // pred_region
    _
  $region5: #{conv1x1_sigmoid.1} parent=0 // pred_fallthru
    _
  // Predicated region
  $region6: #{conv1x1_sigmoid.1} parent=0 // pred_check
    _
  $region7: #{conv1x1_sigmoid.1} parent=0 // pred_check_branch
    %11 = sbr.rel (0) target = $region9
  $region8: #{conv1x1_sigmoid.1} parent=0 // pred_region
    _
  $region9: #{conv1x1_sigmoid.1} parent=0 // pred_fallthru
    _
  // Predicated region
  $region10: #{conv1x1_sigmoid.1} parent=0 // pred_check
    _
  $region11: #{conv1x1_sigmoid.1} parent=0 // pred_check_branch
    %13 = sbr.rel (0) target = $region13
  $region12: #{conv1x1_sigmoid.1} parent=0 // pred_region
    _
  $region13: #{conv1x1_sigmoid.1} parent=0 // pred_fallthru
    _
  %v14 = vld [vmem:[%s1] sm:$0xff]
  %v15 = vld [vmem:[%s1 + $0x8] sm:$0xff]
  %v16 = vld [vmem:[%s1 + $0x10] sm:$0xff]
  %v17 = vld [vmem:[%s1 + $0x18] sm:$0xff]
  %v18 = vld [vmem:[%s1 + $0x20] sm:$0xff]
  %v19 = vld [vmem:[%s1 + $0x28] sm:$0xff]
  %v20 = vld [vmem:[%s1 + $0x30] sm:$0xff]
  %v21 = vld [vmem:[%s1 + $0x38] sm:$0xff]
  %v22 = vld [vmem:[%s1 + $0x40] sm:$0xff]
  %v23 = vld [vmem:[%s1 + $0x48] sm:$0xff]
  %v24 = vld [vmem:[%s1 + $0x50] sm:$0xff]
  %v25 = vld [vmem:[%s1 + $0x58] sm:$0xff]
  %v26 = vld [vmem:[%s1 + $0x60] sm:$0xff]
  %v27 = vld [vmem:[%s1 + $0x68] sm:$0xff]
  %v28 = vld [vmem:[%s1 + $0x70] sm:$0xff]
  %v29 = vld [vmem:[%s1 + $0x78] sm:$0xff]
  %v30 = vld [vmem:[%s1 + $0x80] sm:$0xff]
  %v31 = vld [vmem:[%s1 + $0x88] sm:$0xff]
  %v32 = vld [vmem:[%s1 + $0x90] sm:$0xff]
  %v33 = vld [vmem:[%s1 + $0x98] sm:$0xff]
  %v34 = vld [vmem:[%s1 + $0xa0] sm:$0xff]
  %v35 = vld [vmem:[%s1 + $0xa8] sm:$0xff]
  %v36 = vld [vmem:[%s1 + $0xb0] sm:$0xff]
  %v37 = vld [vmem:[%s1 + $0xb8] sm:$0xff]
  %v38 = vld [vmem:[%s1 + $0xc0] sm:$0xff]
  %v39 = vld [vmem:[%s1 + $0xc8] sm:$0xff]
  %v40 = vld [vmem:[%s1 + $0xd0] sm:$0xff]
  %v41 = vld [vmem:[%s1 + $0xd8] sm:$0xff]
  %v42 = vld [vmem:[%s1 + $0xe0] sm:$0xff]
  %v43 = vld [vmem:[%s1 + $0xe8] sm:$0xff]
  %v44 = vld [vmem:[%s1 + $0xf0] sm:$0xff]
  %v45 = vld [vmem:[%s1 + $0xf8] sm:$0xff]
  %v46 = vld [vmem:[%s1 + $0x100] sm:$0xff]
  %v47 = vld [vmem:[%s1 + $0x108] sm:$0xff]
  %v48 = vld [vmem:[%s1 + $0x110] sm:$0xff]
  %v49 = vld [vmem:[%s1 + $0x118] sm:$0xff]
  %v50 = vld [vmem:[%s1 + $0x120] sm:$0xff]
  %v51 = vld [vmem:[%s1 + $0x128] sm:$0xff]
  %v52 = vld [vmem:[%s1 + $0x130] sm:$0xff]
  %v53 = vld [vmem:[%s1 + $0x138] sm:$0xff]
  %v54 = vld [vmem:[%s1 + $0x140] sm:$0xff]
  %v55 = vld [vmem:[%s1 + $0x148] sm:$0xff]
  %v56 = vld [vmem:[%s1 + $0x150] sm:$0xff]
  %v57 = vld [vmem:[%s1 + $0x158] sm:$0xff]
  %v58 = vld [vmem:[%s1 + $0x160] sm:$0xff]
  %v59 = vld [vmem:[%s1 + $0x168] sm:$0xff]
  %v60 = vld [vmem:[%s1 + $0x170] sm:$0xff]
  %v61 = vld [vmem:[%s1 + $0x178] sm:$0xff]
  %v62 = vld [vmem:[%s1 + $0x180] sm:$0xff]
  %v63 = vld [vmem:[%s1 + $0x188] sm:$0xff]
  %v64 = vld [vmem:[%s1 + $0x190] sm:$0xff]
  %v65 = vld [vmem:[%s1 + $0x198] sm:$0xff]
  %v66 = vld [vmem:[%s1 + $0x1a0] sm:$0xff]
  %v67 = vld [vmem:[%s1 + $0x1a8] sm:$0xff]
  %v68 = vld [vmem:[%s1 + $0x1b0] sm:$0xff]
  %v69 = vld [vmem:[%s1 + $0x1b8] sm:$0xff]
  %v70 = vld [vmem:[%s1 + $0x1c0] sm:$0xff]
  %v71 = vld [vmem:[%s1 + $0x1c8] sm:$0xff]
  %v72 = vld [vmem:[%s1 + $0x1d0] sm:$0xff]
  %v73 = vld [vmem:[%s1 + $0x1d8] sm:$0xff]
  %v74 = vld [vmem:[%s1 + $0x1e0] sm:$0xff]
  %v75 = vld [vmem:[%s1 + $0x1e8] sm:$0xff]
  %v76 = vld [vmem:[%s1 + $0x1f0] sm:$0xff]
  %v77 = vld [vmem:[%s1 + $0x1f8] sm:$0xff]
  %v78 = vld [vmem:[%s1 + $0x200] sm:$0xff]
  %v79 = vld [vmem:[%s1 + $0x208] sm:$0xff]
  %v80 = vld [vmem:[%s1 + $0x210] sm:$0xff]
  %v81 = vld [vmem:[%s1 + $0x218] sm:$0xff]
  %v82 = vld [vmem:[%s1 + $0x220] sm:$0xff]
  %v83 = vld [vmem:[%s1 + $0x228] sm:$0xff]
  %v84 = vld [vmem:[%s1 + $0x230] sm:$0xff]
  %v85 = vld [vmem:[%s1 + $0x238] sm:$0xff]
  %v86 = vld [vmem:[%s1 + $0x240] sm:$0xff]
  %v87 = vld [vmem:[%s1 + $0x248] sm:$0xff]
  %v88 = vld [vmem:[%s1 + $0x250] sm:$0xff]
  %v89 = vld [vmem:[%s1 + $0x258] sm:$0xff]
  %v90 = vld [vmem:[%s1 + $0x260] sm:$0xff]
  %v91 = vld [vmem:[%s1 + $0x268] sm:$0xff]
  %v92 = vld [vmem:[%s1 + $0x270] sm:$0xff]
  %v93 = vld [vmem:[%s1 + $0x278] sm:$0xff]
  %v94 = vld [vmem:[%s1 + $0x280] sm:$0xff]
  %v95 = vld [vmem:[%s1 + $0x288] sm:$0xff]
  %v96 = vld [vmem:[%s1 + $0x290] sm:$0xff]
  %v97 = vld [vmem:[%s1 + $0x298] sm:$0xff]
  %v98 = vld [vmem:[%s1 + $0x2a0] sm:$0xff]
  %v99 = vld [vmem:[%s1 + $0x2a8] sm:$0xff]
  %v100 = vld [vmem:[%s1 + $0x2b0] sm:$0xff]
  %v101 = vld [vmem:[%s1 + $0x2b8] sm:$0xff]
  %v102 = vld [vmem:[%s1 + $0x2c0] sm:$0xff]
  %v103 = vld [vmem:[%s1 + $0x2c8] sm:$0xff]
  %v104 = vld [vmem:[%s1 + $0x2d0] sm:$0xff]
  %v105 = vld [vmem:[%s1 + $0x2d8] sm:$0xff]
  %v106 = vld [vmem:[%s1 + $0x2e0] sm:$0xff]
  %v107 = vld [vmem:[%s1 + $0x2e8] sm:$0xff]
  %v108 = vld [vmem:[%s1 + $0x2f0] sm:$0xff]
  %v109 = vld [vmem:[%s1 + $0x2f8] sm:$0xff]
  %v110 = vld [vmem:[%s1 + $0x300] sm:$0xff]
  %v111 = vld [vmem:[%s1 + $0x308] sm:$0xff]
  %v112 = vld [vmem:[%s1 + $0x310] sm:$0xff]
  %v113 = vld [vmem:[%s1 + $0x318] sm:$0xff]
  %v114 = vld [vmem:[%s1 + $0x320] sm:$0xff]
  %v115 = vld [vmem:[%s1 + $0x328] sm:$0xff]
  %v116 = vld [vmem:[%s1 + $0x330] sm:$0xff]
  %v117 = vld [vmem:[%s1 + $0x338] sm:$0xff]
  %v118 = vld [vmem:[%s1 + $0x340] sm:$0xff]
  %v119 = vld [vmem:[%s1 + $0x348] sm:$0xff]
  %v120 = vld [vmem:[%s1 + $0x350] sm:$0xff]
  %v121 = vld [vmem:[%s1 + $0x358] sm:$0xff]
  %v122 = vld [vmem:[%s0] sm:$0xff]
  %v123 = vld [vmem:[%s0 + $0x8] sm:$0xff]
  %v124 = vld [vmem:[%s0 + $0x10] sm:$0xff]
  %v125 = vld [vmem:[%s0 + $0x18] sm:$0xff]
  %v126 = vld [vmem:[%s0 + $0x20] sm:$0xf]
  %v127 = vld [vmem:[%s2] sm:$0xff]
  %v128 = vld [vmem:[%s2 + $0x8] sm:$0xff]
  %v129 = vld [vmem:[%s2 + $0x10] sm:$0xff]
  %v130 = vld [vmem:[%s2 + $0x18] sm:$0xff]
  %v131 = vld [vmem:[%s2 + $0x20] sm:$0xff]
  %v132 = vld [vmem:[%s2 + $0x28] sm:$0xff]
  %v133 = vld [vmem:[%s2 + $0x30] sm:$0xff]
  %v134 = vld [vmem:[%s2 + $0x38] sm:$0xff]
  %v135 = vld [vmem:[%s2 + $0x40] sm:$0xff]
  %v136 = vld [vmem:[%s2 + $0x48] sm:$0xff]
  %v137 = vld [vmem:[%s2 + $0x50] sm:$0xff]
  %v138 = vld [vmem:[%s2 + $0x58] sm:$0xff]
  %v139 = vld [vmem:[%s2 + $0x60] sm:$0xff]
  %v140 = vld [vmem:[%s2 + $0x68] sm:$0xff]
  %v141 = vld [vmem:[%s2 + $0x70] sm:$0xff]
  %v142 = vld [vmem:[%s2 + $0x78] sm:$0xff]
  %v143 = vld [vmem:[%s2 + $0x80] sm:$0xff]
  %v144 = vld [vmem:[%s2 + $0x88] sm:$0xff]
  %v145 = vld [vmem:[%s2 + $0x90] sm:$0xff]
  %v146 = vld [vmem:[%s2 + $0x98] sm:$0xff]
  %v147 = vld [vmem:[%s2 + $0xa0] sm:$0xff]
  %v148 = vld [vmem:[%s2 + $0xa8] sm:$0xff]
  %v149 = vld [vmem:[%s2 + $0xb0] sm:$0xff]
  %v150 = vld [vmem:[%s2 + $0xb8] sm:$0xff]
  %v151 = vld [vmem:[%s2 + $0xc0] sm:$0xff]
  %v152 = vld [vmem:[%s2 + $0xc8] sm:$0xff]
  %v153 = vld [vmem:[%s2 + $0xd0] sm:$0xff]
  %v154 = vld [vmem:[%s2 + $0xd8] sm:$0xff]
  %v155 = vld [vmem:[%s2 + $0xe0] sm:$0xff]
  %v156 = vld [vmem:[%s2 + $0xe8] sm:$0xff]
  %v157 = vld [vmem:[%s2 + $0xf0] sm:$0xff]
  %v158 = vld [vmem:[%s2 + $0xf8] sm:$0xff]
  %v159 = vld [vmem:[%s2 + $0x100] sm:$0xff]
  %v160 = vld [vmem:[%s2 + $0x108] sm:$0xff]
  %v161 = vld [vmem:[%s2 + $0x110] sm:$0xff]
  %v162 = vld [vmem:[%s2 + $0x118] sm:$0xff]
  %v163 = vld [vmem:[%s2 + $0x120] sm:$0xff]
  %v164 = vld [vmem:[%s2 + $0x128] sm:$0xff]
  %v165 = vld [vmem:[%s2 + $0x130] sm:$0xff]
  %v166 = vld [vmem:[%s2 + $0x138] sm:$0xff]
  %v167 = vld [vmem:[%s2 + $0x140] sm:$0xff]
  %v168 = vld [vmem:[%s2 + $0x148] sm:$0xff]
  %v169 = vld [vmem:[%s2 + $0x150] sm:$0xff]
  %v170 = vld [vmem:[%s2 + $0x158] sm:$0xff]
  %v171 = vld [vmem:[%s2 + $0x160] sm:$0xff]
  %v172 = vld [vmem:[%s2 + $0x168] sm:$0xff]
  %v173 = vld [vmem:[%s2 + $0x170] sm:$0xff]
  %v174 = vld [vmem:[%s2 + $0x178] sm:$0xff]
  %v175 = vld [vmem:[%s2 + $0x180] sm:$0xff]
  %v176 = vld [vmem:[%s2 + $0x188] sm:$0xff]
  %v177 = vld [vmem:[%s2 + $0x190] sm:$0xff]
  %v178 = vld [vmem:[%s2 + $0x198] sm:$0xff]
  %v179 = vld [vmem:[%s2 + $0x1a0] sm:$0xff]
  %v180 = vld [vmem:[%s2 + $0x1a8] sm:$0xff]
  %v181 = vld [vmem:[%s2 + $0x1b0] sm:$0xff]
  %v182 = vld [vmem:[%s2 + $0x1b8] sm:$0xff]
  %v183 = vld [vmem:[%s2 + $0x1c0] sm:$0xff]
  %v184 = vld [vmem:[%s2 + $0x1c8] sm:$0xff]
  %v185 = vld [vmem:[%s2 + $0x1d0] sm:$0xff]
  %v186 = vld [vmem:[%s2 + $0x1d8] sm:$0xff]
  %v187 = vld [vmem:[%s2 + $0x1e0] sm:$0xff]
  %v188 = vld [vmem:[%s2 + $0x1e8] sm:$0xff]
  %v189 = vld [vmem:[%s2 + $0x1f0] sm:$0xff]
  %v190 = vld [vmem:[%s2 + $0x1f8] sm:$0xff]
  %v191 = vld [vmem:[%s2 + $0x200] sm:$0xff]
  %v192 = vld [vmem:[%s2 + $0x208] sm:$0xff]
  %v193 = vld [vmem:[%s2 + $0x210] sm:$0xff]
  %v194 = vld [vmem:[%s2 + $0x218] sm:$0xff]
  %v195 = vld [vmem:[%s2 + $0x220] sm:$0xff]
  %v196 = vld [vmem:[%s2 + $0x228] sm:$0xff]
  %v197 = vld [vmem:[%s2 + $0x230] sm:$0xff]
  %v198 = vld [vmem:[%s2 + $0x238] sm:$0xff]
  %v199 = vld [vmem:[%s2 + $0x240] sm:$0xff]
  %v200 = vld [vmem:[%s2 + $0x248] sm:$0xff]
  %v201 = vld [vmem:[%s2 + $0x250] sm:$0xff]
  %v202 = vld [vmem:[%s2 + $0x258] sm:$0xff]
  %v203 = vld [vmem:[%s2 + $0x260] sm:$0xff]
  %v204 = vld [vmem:[%s2 + $0x268] sm:$0xff]
  %v205 = vld [vmem:[%s2 + $0x270] sm:$0xff]
  %v206 = vld [vmem:[%s2 + $0x278] sm:$0xff]
  %v207 = vld [vmem:[%s2 + $0x280] sm:$0xff]
  %v208 = vld [vmem:[%s2 + $0x288] sm:$0xff]
  %v209 = vld [vmem:[%s2 + $0x290] sm:$0xff]
  %v210 = vld [vmem:[%s2 + $0x298] sm:$0xff]
  %v211 = vld [vmem:[%s2 + $0x2a0] sm:$0xff]
  %v212 = vld [vmem:[%s2 + $0x2a8] sm:$0xff]
  %v213 = vld [vmem:[%s2 + $0x2b0] sm:$0xff]
  %v214 = vld [vmem:[%s2 + $0x2b8] sm:$0xff]
  %v215 = vld [vmem:[%s2 + $0x2c0] sm:$0xff]
  %v216 = vld [vmem:[%s2 + $0x2c8] sm:$0xff]
  %v217 = vld [vmem:[%s2 + $0x2d0] sm:$0xff]
  %v218 = vld [vmem:[%s2 + $0x2d8] sm:$0xff]
  %v219 = vld [vmem:[%s2 + $0x2e0] sm:$0xff]
  %v220 = vld [vmem:[%s2 + $0x2e8] sm:$0xff]
  %v221 = vld [vmem:[%s2 + $0x2f0] sm:$0xff]
  %v222 = vld [vmem:[%s2 + $0x2f8] sm:$0xff]
  %v223 = vld [vmem:[%s2 + $0x300] sm:$0xff]
  %v224 = vld [vmem:[%s2 + $0x308] sm:$0xff]
  %v225 = vld [vmem:[%s2 + $0x310] sm:$0xff]
  %v226 = vld [vmem:[%s2 + $0x318] sm:$0xff]
  %v227 = vld [vmem:[%s2 + $0x320] sm:$0xff]
  %v228 = vld [vmem:[%s2 + $0x328] sm:$0xff]
  %v229 = vld [vmem:[%s2 + $0x330] sm:$0xff]
  %v230 = vld [vmem:[%s2 + $0x338] sm:$0xff]
  %v231 = vld [vmem:[%s2 + $0x340] sm:$0xff]
  %v232 = vld [vmem:[%s2 + $0x348] sm:$0xff]
  %v233 = vld [vmem:[%s2 + $0x350] sm:$0xff]
  %v234 = vld [vmem:[%s2 + $0x358] sm:$0xff]
  %vm235 = vcmask 293888
  %v237 = vsel %vm235, %v14, 0
  %v240 = vsel %vm235, %v15, 0
  %v243 = vsel %vm235, %v16, 0
  %v246 = vsel %vm235, %v17, 0
  %v249 = vsel %vm235, %v18, 0
  %v252 = vsel %vm235, %v19, 0
  %v255 = vsel %vm235, %v20, 0
  %v258 = vsel %vm235, %v21, 0
  %v261 = vsel %vm235, %v22, 0
  %v264 = vsel %vm235, %v23, 0
  %v267 = vsel %vm235, %v24, 0
  %v270 = vsel %vm235, %v25, 0
  %v273 = vsel %vm235, %v26, 0
  %v276 = vsel %vm235, %v27, 0
  %v279 = vsel %vm235, %v28, 0
  %v282 = vsel %vm235, %v29, 0
  %v285 = vsel %vm235, %v30, 0
  %v288 = vsel %vm235, %v31, 0
  %v291 = vsel %vm235, %v32, 0
  %v294 = vsel %vm235, %v33, 0
  %v297 = vsel %vm235, %v34, 0
  %v300 = vsel %vm235, %v35, 0
  %v303 = vsel %vm235, %v36, 0
  %v306 = vsel %vm235, %v37, 0
  %v309 = vsel %vm235, %v38, 0
  %v312 = vsel %vm235, %v39, 0
  %v315 = vsel %vm235, %v40, 0
  %v318 = vsel %vm235, %v41, 0
  %v321 = vsel %vm235, %v42, 0
  %v324 = vsel %vm235, %v43, 0
  %v327 = vsel %vm235, %v44, 0
  %v330 = vsel %vm235, %v45, 0
  %v333 = vsel %vm235, %v46, 0
  %v336 = vsel %vm235, %v47, 0
  %v339 = vsel %vm235, %v48, 0
  %v342 = vsel %vm235, %v49, 0
  %v345 = vsel %vm235, %v50, 0
  %v348 = vsel %vm235, %v51, 0
  %v351 = vsel %vm235, %v52, 0
  %v354 = vsel %vm235, %v53, 0
  %v357 = vsel %vm235, %v54, 0
  %v360 = vsel %vm235, %v55, 0
  %v363 = vsel %vm235, %v56, 0
  %v366 = vsel %vm235, %v57, 0
  %v369 = vsel %vm235, %v58, 0
  %v372 = vsel %vm235, %v59, 0
  %v375 = vsel %vm235, %v60, 0
  %v378 = vsel %vm235, %v61, 0
  %v381 = vsel %vm235, %v62, 0
  %v384 = vsel %vm235, %v63, 0
  %v387 = vsel %vm235, %v64, 0
  %v390 = vsel %vm235, %v65, 0
  %v393 = vsel %vm235, %v66, 0
  %v396 = vsel %vm235, %v67, 0
  %v399 = vsel %vm235, %v68, 0
  %v402 = vsel %vm235, %v69, 0
  %v405 = vsel %vm235, %v70, 0
  %v408 = vsel %vm235, %v71, 0
  %v411 = vsel %vm235, %v72, 0
  %v414 = vsel %vm235, %v73, 0
  %v417 = vsel %vm235, %v74, 0
  %v420 = vsel %vm235, %v75, 0
  %v423 = vsel %vm235, %v76, 0
  %v426 = vsel %vm235, %v77, 0
  %v429 = vsel %vm235, %v78, 0
  %v432 = vsel %vm235, %v79, 0
  %v435 = vsel %vm235, %v80, 0
  %v438 = vsel %vm235, %v81, 0
  %v441 = vsel %vm235, %v82, 0
  %v444 = vsel %vm235, %v83, 0
  %v447 = vsel %vm235, %v84, 0
  %v450 = vsel %vm235, %v85, 0
  %v453 = vsel %vm235, %v86, 0
  %v456 = vsel %vm235, %v87, 0
  %v459 = vsel %vm235, %v88, 0
  %v462 = vsel %vm235, %v89, 0
  %v465 = vsel %vm235, %v90, 0
  %v468 = vsel %vm235, %v91, 0
  %v471 = vsel %vm235, %v92, 0
  %v474 = vsel %vm235, %v93, 0
  %v477 = vsel %vm235, %v94, 0
  %v480 = vsel %vm235, %v95, 0
  %v483 = vsel %vm235, %v96, 0
  %v486 = vsel %vm235, %v97, 0
  %v489 = vsel %vm235, %v98, 0
  %v492 = vsel %vm235, %v99, 0
  %v495 = vsel %vm235, %v100, 0
  %v498 = vsel %vm235, %v101, 0
  %v501 = vsel %vm235, %v102, 0
  %v504 = vsel %vm235, %v103, 0
  %v507 = vsel %vm235, %v104, 0
  %v510 = vsel %vm235, %v105, 0
  %v513 = vsel %vm235, %v106, 0
  %v516 = vsel %vm235, %v107, 0
  %v519 = vsel %vm235, %v108, 0
  %v522 = vsel %vm235, %v109, 0
  %v525 = vsel %vm235, %v110, 0
  %v528 = vsel %vm235, %v111, 0
  %v531 = vsel %vm235, %v112, 0
  %v534 = vsel %vm235, %v113, 0
  %v537 = vsel %vm235, %v114, 0
  %v540 = vsel %vm235, %v115, 0
  %v543 = vsel %vm235, %v116, 0
  %v546 = vsel %vm235, %v117, 0
  %v549 = vsel %vm235, %v118, 0
  %v552 = vsel %vm235, %v119, 0
  %v555 = vsel %vm235, %v120, 0
  %v558 = vsel %vm235, %v121, 0
  %vm560 = vcmask 1043456
  %v562 = vsel %vm560, %v126, 0
  %564 = vmatprep.subr.mxu0 0.0
  %565 = vmatpush1.msra.mxu0 0.0
  %566 = vmatprep.subr.mxu0 0.0
  %567 = vmatpush1.msra.mxu0 0.0
  %568 = vmatprep.subr.mxu0 0.0
  %569 = vmatpush1.msra.mxu0 0.0
  %570 = vmatprep.subr.mxu0 0.0
  %571 = vmatpush1.msra.mxu0 0.0
  %572 = vmatprep.subr.mxu0 0.0
  %573 = vmatpush1.msra.mxu0 0.0
  %574 = vmatprep.subr.mxu0 0.0
  %575 = vmatpush1.msra.mxu0 0.0
  %576 = vmatprep.subr.mxu0 0.0
  %577 = vmatpush1.msra.mxu0 0.0
  %578 = vmatprep.subr.mxu0 0.0
  %579 = vmatpush1.msra.mxu0 0.0
  %580 = vmatprep.subr.mxu0 0.0
  %581 = vmatpush1.msra.mxu0 0.0
  %582 = vmatprep.subr.mxu0 0.0
  %583 = vmatpush1.msra.mxu0 0.0
  %584 = vmatprep.subr.mxu0 0.0
  %585 = vmatpush1.msra.mxu0 0.0
  %586 = vmatprep.subr.mxu0 0.0
  %587 = vmatpush1.msra.mxu0 %v562
  %588 = vmatprep.subr.mxu0 0.0
  %589 = vmatpush1.msra.mxu0 %v125
  %590 = vmatprep.subr.mxu0 0.0
  %591 = vmatpush1.msra.mxu0 %v124
  %592 = vmatprep.subr.mxu0 0.0
  %593 = vmatpush1.msra.mxu0 %v123
  %594 = vmatprep.subr.mxu0 0.0
  %595 = vmatpush1.msra.mxu0 %v122
  %596 = vmatprep.subr.mxu0 0.0
  %597 = vmatpush2.msra.mxu0 0.0
  %598 = vmatprep.subr.mxu0 0.0
  %599 = vmatpush2.msra.mxu0 0.0
  %600 = vmatprep.subr.mxu0 0.0
  %601 = vmatpush2.msra.mxu0 0.0
  %602 = vmatprep.subr.mxu0 0.0
  %603 = vmatpush2.msra.mxu0 0.0
  %604 = vmatprep.subr.mxu0 0.0
  %605 = vmatpush2.msra.mxu0 0.0
  %606 = vmatprep.subr.mxu0 0.0
  %607 = vmatpush2.msra.mxu0 0.0
  %608 = vmatprep.subr.mxu0 0.0
  %609 = vmatpush2.msra.mxu0 0.0
  %610 = vmatprep.subr.mxu0 0.0
  %611 = vmatpush2.msra.mxu0 0.0
  %612 = vmatprep.subr.mxu0 0.0
  %613 = vmatpush2.msra.mxu0 0.0
  %614 = vmatprep.subr.mxu0 0.0
  %615 = vmatpush2.msra.mxu0 0.0
  %616 = vmatprep.subr.mxu0 0.0
  %617 = vmatpush2.msra.mxu0 0.0
  %618 = vmatprep.subr.mxu0 0.0
  %619 = vmatpush2.msra.mxu0 0.0
  %620 = vmatprep.subr.mxu0 0.0
  %621 = vmatpush2.msra.mxu0 0.0
  %622 = vmatprep.subr.mxu0 0.0
  %623 = vmatpush2.msra.mxu0 0.0
  %624 = vmatprep.subr.mxu0 0.0
  %625 = vmatpush2.msra.mxu0 0.0
  %626 = vmatprep.subr.mxu0 0.0
  %627 = vmatpush2.msra.mxu0 0.0
  %628 = vmatprep.mubr.f32.mxu0 0.0
  %629 = vmatmul.mubr.f32.gmra.mxu0 %v237
  %v630 = vpop.f32.mrf.mxu0
  %v631 = vadd.f32 %v127, %v630
  %v632 = vpop.f32.mrf.mxu0
  %633 = vmatprep.mubr.f32.mxu0 0.0
  %634 = vmatmul.mubr.f32.gmra.mxu0 %v240
  %v635 = vpop.f32.mrf.mxu0
  %v636 = vadd.f32 %v128, %v635
  %v637 = vpop.f32.mrf.mxu0
  %638 = vmatprep.mubr.f32.mxu0 0.0
  %639 = vmatmul.mubr.f32.gmra.mxu0 %v243
  %v640 = vpop.f32.mrf.mxu0
  %v641 = vadd.f32 %v129, %v640
  %v642 = vpop.f32.mrf.mxu0
  %643 = vmatprep.mubr.f32.mxu0 0.0
  %644 = vmatmul.mubr.f32.gmra.mxu0 %v246
  %v645 = vpop.f32.mrf.mxu0
  %v646 = vadd.f32 %v130, %v645
  %v647 = vpop.f32.mrf.mxu0
  %648 = vmatprep.mubr.f32.mxu0 0.0
  %649 = vmatmul.mubr.f32.gmra.mxu0 %v249
  %v650 = vpop.f32.mrf.mxu0
  %v651 = vadd.f32 %v131, %v650
  %v652 = vpop.f32.mrf.mxu0
  %653 = vmatprep.mubr.f32.mxu0 0.0
  %654 = vmatmul.mubr.f32.gmra.mxu0 %v252
  %v655 = vpop.f32.mrf.mxu0
  %v656 = vadd.f32 %v132, %v655
  %v657 = vpop.f32.mrf.mxu0
  %658 = vmatprep.mubr.f32.mxu0 0.0
  %659 = vmatmul.mubr.f32.gmra.mxu0 %v255
  %v660 = vpop.f32.mrf.mxu0
  %v661 = vadd.f32 %v133, %v660
  %v662 = vpop.f32.mrf.mxu0
  %663 = vmatprep.mubr.f32.mxu0 0.0
  %664 = vmatmul.mubr.f32.gmra.mxu0 %v258
  %v665 = vpop.f32.mrf.mxu0
  %v666 = vadd.f32 %v134, %v665
  %v667 = vpop.f32.mrf.mxu0
  %668 = vmatprep.mubr.f32.mxu0 0.0
  %669 = vmatmul.mubr.f32.gmra.mxu0 %v261
  %v670 = vpop.f32.mrf.mxu0
  %v671 = vadd.f32 %v135, %v670
  %v672 = vpop.f32.mrf.mxu0
  %673 = vmatprep.mubr.f32.mxu0 0.0
  %674 = vmatmul.mubr.f32.gmra.mxu0 %v264
  %v675 = vpop.f32.mrf.mxu0
  %v676 = vadd.f32 %v136, %v675
  %v677 = vpop.f32.mrf.mxu0
  %678 = vmatprep.mubr.f32.mxu0 0.0
  %679 = vmatmul.mubr.f32.gmra.mxu0 %v267
  %v680 = vpop.f32.mrf.mxu0
  %v681 = vadd.f32 %v137, %v680
  %v682 = vpop.f32.mrf.mxu0
  %683 = vmatprep.mubr.f32.mxu0 0.0
  %684 = vmatmul.mubr.f32.gmra.mxu0 %v270
  %v685 = vpop.f32.mrf.mxu0
  %v686 = vadd.f32 %v138, %v685
  %v687 = vpop.f32.mrf.mxu0
  %688 = vmatprep.mubr.f32.mxu0 0.0
  %689 = vmatmul.mubr.f32.gmra.mxu0 %v273
  %v690 = vpop.f32.mrf.mxu0
  %v691 = vadd.f32 %v139, %v690
  %v692 = vpop.f32.mrf.mxu0
  %693 = vmatprep.mubr.f32.mxu0 0.0
  %694 = vmatmul.mubr.f32.gmra.mxu0 %v276
  %v695 = vpop.f32.mrf.mxu0
  %v696 = vadd.f32 %v140, %v695
  %v697 = vpop.f32.mrf.mxu0
  %698 = vmatprep.mubr.f32.mxu0 0.0
  %699 = vmatmul.mubr.f32.gmra.mxu0 %v279
  %v700 = vpop.f32.mrf.mxu0
  %v701 = vadd.f32 %v141, %v700
  %v702 = vpop.f32.mrf.mxu0
  %703 = vmatprep.mubr.f32.mxu0 0.0
  %704 = vmatmul.mubr.f32.gmra.mxu0 %v282
  %v705 = vpop.f32.mrf.mxu0
  %v706 = vadd.f32 %v142, %v705
  %v707 = vpop.f32.mrf.mxu0
  %708 = vmatprep.mubr.f32.mxu0 0.0
  %709 = vmatmul.mubr.f32.gmra.mxu0 %v285
  %v710 = vpop.f32.mrf.mxu0
  %v711 = vadd.f32 %v143, %v710
  %v712 = vpop.f32.mrf.mxu0
  %713 = vmatprep.mubr.f32.mxu0 0.0
  %714 = vmatmul.mubr.f32.gmra.mxu0 %v288
  %v715 = vpop.f32.mrf.mxu0
  %v716 = vadd.f32 %v144, %v715
  %v717 = vpop.f32.mrf.mxu0
  %718 = vmatprep.mubr.f32.mxu0 0.0
  %719 = vmatmul.mubr.f32.gmra.mxu0 %v291
  %v720 = vpop.f32.mrf.mxu0
  %v721 = vadd.f32 %v145, %v720
  %v722 = vpop.f32.mrf.mxu0
  %723 = vmatprep.mubr.f32.mxu0 0.0
  %724 = vmatmul.mubr.f32.gmra.mxu0 %v294
  %v725 = vpop.f32.mrf.mxu0
  %v726 = vadd.f32 %v146, %v725
  %v727 = vpop.f32.mrf.mxu0
  %728 = vmatprep.mubr.f32.mxu0 0.0
  %729 = vmatmul.mubr.f32.gmra.mxu0 %v297
  %v730 = vpop.f32.mrf.mxu0
  %v731 = vadd.f32 %v147, %v730
  %v732 = vpop.f32.mrf.mxu0
  %733 = vmatprep.mubr.f32.mxu0 0.0
  %734 = vmatmul.mubr.f32.gmra.mxu0 %v300
  %v735 = vpop.f32.mrf.mxu0
  %v736 = vadd.f32 %v148, %v735
  %v737 = vpop.f32.mrf.mxu0
  %738 = vmatprep.mubr.f32.mxu0 0.0
  %739 = vmatmul.mubr.f32.gmra.mxu0 %v303
  %v740 = vpop.f32.mrf.mxu0
  %v741 = vadd.f32 %v149, %v740
  %v742 = vpop.f32.mrf.mxu0
  %743 = vmatprep.mubr.f32.mxu0 0.0
  %744 = vmatmul.mubr.f32.gmra.mxu0 %v306
  %v745 = vpop.f32.mrf.mxu0
  %v746 = vadd.f32 %v150, %v745
  %v747 = vpop.f32.mrf.mxu0
  %748 = vmatprep.mubr.f32.mxu0 0.0
  %749 = vmatmul.mubr.f32.gmra.mxu0 %v309
  %v750 = vpop.f32.mrf.mxu0
  %v751 = vadd.f32 %v151, %v750
  %v752 = vpop.f32.mrf.mxu0
  %753 = vmatprep.mubr.f32.mxu0 0.0
  %754 = vmatmul.mubr.f32.gmra.mxu0 %v312
  %v755 = vpop.f32.mrf.mxu0
  %v756 = vadd.f32 %v152, %v755
  %v757 = vpop.f32.mrf.mxu0
  %758 = vmatprep.mubr.f32.mxu0 0.0
  %759 = vmatmul.mubr.f32.gmra.mxu0 %v315
  %v760 = vpop.f32.mrf.mxu0
  %v761 = vadd.f32 %v153, %v760
  %v762 = vpop.f32.mrf.mxu0
  %763 = vmatprep.mubr.f32.mxu0 0.0
  %764 = vmatmul.mubr.f32.gmra.mxu0 %v318
  %v765 = vpop.f32.mrf.mxu0
  %v766 = vadd.f32 %v154, %v765
  %v767 = vpop.f32.mrf.mxu0
  %768 = vmatprep.mubr.f32.mxu0 0.0
  %769 = vmatmul.mubr.f32.gmra.mxu0 %v321
  %v770 = vpop.f32.mrf.mxu0
  %v771 = vadd.f32 %v155, %v770
  %v772 = vpop.f32.mrf.mxu0
  %773 = vmatprep.mubr.f32.mxu0 0.0
  %774 = vmatmul.mubr.f32.gmra.mxu0 %v324
  %v775 = vpop.f32.mrf.mxu0
  %v776 = vadd.f32 %v156, %v775
  %v777 = vpop.f32.mrf.mxu0
  %778 = vmatprep.mubr.f32.mxu0 0.0
  %779 = vmatmul.mubr.f32.gmra.mxu0 %v327
  %v780 = vpop.f32.mrf.mxu0
  %v781 = vadd.f32 %v157, %v780
  %v782 = vpop.f32.mrf.mxu0
  %783 = vmatprep.mubr.f32.mxu0 0.0
  %784 = vmatmul.mubr.f32.gmra.mxu0 %v330
  %v785 = vpop.f32.mrf.mxu0
  %v786 = vadd.f32 %v158, %v785
  %v787 = vpop.f32.mrf.mxu0
  %788 = vmatprep.mubr.f32.mxu0 0.0
  %789 = vmatmul.mubr.f32.gmra.mxu0 %v333
  %v790 = vpop.f32.mrf.mxu0
  %v791 = vadd.f32 %v159, %v790
  %v792 = vpop.f32.mrf.mxu0
  %793 = vmatprep.mubr.f32.mxu0 0.0
  %794 = vmatmul.mubr.f32.gmra.mxu0 %v336
  %v795 = vpop.f32.mrf.mxu0
  %v796 = vadd.f32 %v160, %v795
  %v797 = vpop.f32.mrf.mxu0
  %798 = vmatprep.mubr.f32.mxu0 0.0
  %799 = vmatmul.mubr.f32.gmra.mxu0 %v339
  %v800 = vpop.f32.mrf.mxu0
  %v801 = vadd.f32 %v161, %v800
  %v802 = vpop.f32.mrf.mxu0
  %803 = vmatprep.mubr.f32.mxu0 0.0
  %804 = vmatmul.mubr.f32.gmra.mxu0 %v342
  %v805 = vpop.f32.mrf.mxu0
  %v806 = vadd.f32 %v162, %v805
  %v807 = vpop.f32.mrf.mxu0
  %808 = vmatprep.mubr.f32.mxu0 0.0
  %809 = vmatmul.mubr.f32.gmra.mxu0 %v345
  %v810 = vpop.f32.mrf.mxu0
  %v811 = vadd.f32 %v163, %v810
  %v812 = vpop.f32.mrf.mxu0
  %813 = vmatprep.mubr.f32.mxu0 0.0
  %814 = vmatmul.mubr.f32.gmra.mxu0 %v348
  %v815 = vpop.f32.mrf.mxu0
  %v816 = vadd.f32 %v164, %v815
  %v817 = vpop.f32.mrf.mxu0
  %818 = vmatprep.mubr.f32.mxu0 0.0
  %819 = vmatmul.mubr.f32.gmra.mxu0 %v351
  %v820 = vpop.f32.mrf.mxu0
  %v821 = vadd.f32 %v165, %v820
  %v822 = vpop.f32.mrf.mxu0
  %823 = vmatprep.mubr.f32.mxu0 0.0
  %824 = vmatmul.mubr.f32.gmra.mxu0 %v354
  %v825 = vpop.f32.mrf.mxu0
  %v826 = vadd.f32 %v166, %v825
  %v827 = vpop.f32.mrf.mxu0
  %828 = vmatprep.mubr.f32.mxu0 0.0
  %829 = vmatmul.mubr.f32.gmra.mxu0 %v357
  %v830 = vpop.f32.mrf.mxu0
  %v831 = vadd.f32 %v167, %v830
  %v832 = vpop.f32.mrf.mxu0
  %833 = vmatprep.mubr.f32.mxu0 0.0
  %834 = vmatmul.mubr.f32.gmra.mxu0 %v360
  %v835 = vpop.f32.mrf.mxu0
  %v836 = vadd.f32 %v168, %v835
  %v837 = vpop.f32.mrf.mxu0
  %838 = vmatprep.mubr.f32.mxu0 0.0
  %839 = vmatmul.mubr.f32.gmra.mxu0 %v363
  %v840 = vpop.f32.mrf.mxu0
  %v841 = vadd.f32 %v169, %v840
  %v842 = vpop.f32.mrf.mxu0
  %843 = vmatprep.mubr.f32.mxu0 0.0
  %844 = vmatmul.mubr.f32.gmra.mxu0 %v366
  %v845 = vpop.f32.mrf.mxu0
  %v846 = vadd.f32 %v170, %v845
  %v847 = vpop.f32.mrf.mxu0
  %848 = vmatprep.mubr.f32.mxu0 0.0
  %849 = vmatmul.mubr.f32.gmra.mxu0 %v369
  %v850 = vpop.f32.mrf.mxu0
  %v851 = vadd.f32 %v171, %v850
  %v852 = vpop.f32.mrf.mxu0
  %853 = vmatprep.mubr.f32.mxu0 0.0
  %854 = vmatmul.mubr.f32.gmra.mxu0 %v372
  %v855 = vpop.f32.mrf.mxu0
  %v856 = vadd.f32 %v172, %v855
  %v857 = vpop.f32.mrf.mxu0
  %858 = vmatprep.mubr.f32.mxu0 0.0
  %859 = vmatmul.mubr.f32.gmra.mxu0 %v375
  %v860 = vpop.f32.mrf.mxu0
  %v861 = vadd.f32 %v173, %v860
  %v862 = vpop.f32.mrf.mxu0
  %863 = vmatprep.mubr.f32.mxu0 0.0
  %864 = vmatmul.mubr.f32.gmra.mxu0 %v378
  %v865 = vpop.f32.mrf.mxu0
  %v866 = vadd.f32 %v174, %v865
  %v867 = vpop.f32.mrf.mxu0
  %868 = vmatprep.mubr.f32.mxu0 0.0
  %869 = vmatmul.mubr.f32.gmra.mxu0 %v381
  %v870 = vpop.f32.mrf.mxu0
  %v871 = vadd.f32 %v175, %v870
  %v872 = vpop.f32.mrf.mxu0
  %873 = vmatprep.mubr.f32.mxu0 0.0
  %874 = vmatmul.mubr.f32.gmra.mxu0 %v384
  %v875 = vpop.f32.mrf.mxu0
  %v876 = vadd.f32 %v176, %v875
  %v877 = vpop.f32.mrf.mxu0
  %878 = vmatprep.mubr.f32.mxu0 0.0
  %879 = vmatmul.mubr.f32.gmra.mxu0 %v387
  %v880 = vpop.f32.mrf.mxu0
  %v881 = vadd.f32 %v177, %v880
  %v882 = vpop.f32.mrf.mxu0
  %883 = vmatprep.mubr.f32.mxu0 0.0
  %884 = vmatmul.mubr.f32.gmra.mxu0 %v390
  %v885 = vpop.f32.mrf.mxu0
  %v886 = vadd.f32 %v178, %v885
  %v887 = vpop.f32.mrf.mxu0
  %888 = vmatprep.mubr.f32.mxu0 0.0
  %889 = vmatmul.mubr.f32.gmra.mxu0 %v393
  %v890 = vpop.f32.mrf.mxu0
  %v891 = vadd.f32 %v179, %v890
  %v892 = vpop.f32.mrf.mxu0
  %893 = vmatprep.mubr.f32.mxu0 0.0
  %894 = vmatmul.mubr.f32.gmra.mxu0 %v396
  %v895 = vpop.f32.mrf.mxu0
  %v896 = vadd.f32 %v180, %v895
  %v897 = vpop.f32.mrf.mxu0
  %898 = vmatprep.mubr.f32.mxu0 0.0
  %899 = vmatmul.mubr.f32.gmra.mxu0 %v399
  %v900 = vpop.f32.mrf.mxu0
  %v901 = vadd.f32 %v181, %v900
  %v902 = vpop.f32.mrf.mxu0
  %903 = vmatprep.mubr.f32.mxu0 0.0
  %904 = vmatmul.mubr.f32.gmra.mxu0 %v402
  %v905 = vpop.f32.mrf.mxu0
  %v906 = vadd.f32 %v182, %v905
  %v907 = vpop.f32.mrf.mxu0
  %908 = vmatprep.mubr.f32.mxu0 0.0
  %909 = vmatmul.mubr.f32.gmra.mxu0 %v405
  %v910 = vpop.f32.mrf.mxu0
  %v911 = vadd.f32 %v183, %v910
  %v912 = vpop.f32.mrf.mxu0
  %913 = vmatprep.mubr.f32.mxu0 0.0
  %914 = vmatmul.mubr.f32.gmra.mxu0 %v408
  %v915 = vpop.f32.mrf.mxu0
  %v916 = vadd.f32 %v184, %v915
  %v917 = vpop.f32.mrf.mxu0
  %918 = vmatprep.mubr.f32.mxu0 0.0
  %919 = vmatmul.mubr.f32.gmra.mxu0 %v411
  %v920 = vpop.f32.mrf.mxu0
  %v921 = vadd.f32 %v185, %v920
  %v922 = vpop.f32.mrf.mxu0
  %923 = vmatprep.mubr.f32.mxu0 0.0
  %924 = vmatmul.mubr.f32.gmra.mxu0 %v414
  %v925 = vpop.f32.mrf.mxu0
  %v926 = vadd.f32 %v186, %v925
  %v927 = vpop.f32.mrf.mxu0
  %928 = vmatprep.mubr.f32.mxu0 0.0
  %929 = vmatmul.mubr.f32.gmra.mxu0 %v417
  %v930 = vpop.f32.mrf.mxu0
  %v931 = vadd.f32 %v187, %v930
  %v932 = vpop.f32.mrf.mxu0
  %933 = vmatprep.mubr.f32.mxu0 0.0
  %934 = vmatmul.mubr.f32.gmra.mxu0 %v420
  %v935 = vpop.f32.mrf.mxu0
  %v936 = vadd.f32 %v188, %v935
  %v937 = vpop.f32.mrf.mxu0
  %938 = vmatprep.mubr.f32.mxu0 0.0
  %939 = vmatmul.mubr.f32.gmra.mxu0 %v423
  %v940 = vpop.f32.mrf.mxu0
  %v941 = vadd.f32 %v189, %v940
  %v942 = vpop.f32.mrf.mxu0
  %943 = vmatprep.mubr.f32.mxu0 0.0
  %944 = vmatmul.mubr.f32.gmra.mxu0 %v426
  %v945 = vpop.f32.mrf.mxu0
  %v946 = vadd.f32 %v190, %v945
  %v947 = vpop.f32.mrf.mxu0
  %948 = vmatprep.mubr.f32.mxu0 0.0
  %949 = vmatmul.mubr.f32.gmra.mxu0 %v429
  %v950 = vpop.f32.mrf.mxu0
  %v951 = vadd.f32 %v191, %v950
  %v952 = vpop.f32.mrf.mxu0
  %953 = vmatprep.mubr.f32.mxu0 0.0
  %954 = vmatmul.mubr.f32.gmra.mxu0 %v432
  %v955 = vpop.f32.mrf.mxu0
  %v956 = vadd.f32 %v192, %v955
  %v957 = vpop.f32.mrf.mxu0
  %958 = vmatprep.mubr.f32.mxu0 0.0
  %959 = vmatmul.mubr.f32.gmra.mxu0 %v435
  %v960 = vpop.f32.mrf.mxu0
  %v961 = vadd.f32 %v193, %v960
  %v962 = vpop.f32.mrf.mxu0
  %963 = vmatprep.mubr.f32.mxu0 0.0
  %964 = vmatmul.mubr.f32.gmra.mxu0 %v438
  %v965 = vpop.f32.mrf.mxu0
  %v966 = vadd.f32 %v194, %v965
  %v967 = vpop.f32.mrf.mxu0
  %968 = vmatprep.mubr.f32.mxu0 0.0
  %969 = vmatmul.mubr.f32.gmra.mxu0 %v441
  %v970 = vpop.f32.mrf.mxu0
  %v971 = vadd.f32 %v195, %v970
  %v972 = vpop.f32.mrf.mxu0
  %973 = vmatprep.mubr.f32.mxu0 0.0
  %974 = vmatmul.mubr.f32.gmra.mxu0 %v444
  %v975 = vpop.f32.mrf.mxu0
  %v976 = vadd.f32 %v196, %v975
  %v977 = vpop.f32.mrf.mxu0
  %978 = vmatprep.mubr.f32.mxu0 0.0
  %979 = vmatmul.mubr.f32.gmra.mxu0 %v447
  %v980 = vpop.f32.mrf.mxu0
  %v981 = vadd.f32 %v197, %v980
  %v982 = vpop.f32.mrf.mxu0
  %983 = vmatprep.mubr.f32.mxu0 0.0
  %984 = vmatmul.mubr.f32.gmra.mxu0 %v450
  %v985 = vpop.f32.mrf.mxu0
  %v986 = vadd.f32 %v198, %v985
  %v987 = vpop.f32.mrf.mxu0
  %988 = vmatprep.mubr.f32.mxu0 0.0
  %989 = vmatmul.mubr.f32.gmra.mxu0 %v453
  %v990 = vpop.f32.mrf.mxu0
  %v991 = vadd.f32 %v199, %v990
  %v992 = vpop.f32.mrf.mxu0
  %993 = vmatprep.mubr.f32.mxu0 0.0
  %994 = vmatmul.mubr.f32.gmra.mxu0 %v456
  %v995 = vpop.f32.mrf.mxu0
  %v996 = vadd.f32 %v200, %v995
  %v997 = vpop.f32.mrf.mxu0
  %998 = vmatprep.mubr.f32.mxu0 0.0
  %999 = vmatmul.mubr.f32.gmra.mxu0 %v459
  %v1000 = vpop.f32.mrf.mxu0
  %v1001 = vadd.f32 %v201, %v1000
  %v1002 = vpop.f32.mrf.mxu0
  %1003 = vmatprep.mubr.f32.mxu0 0.0
  %1004 = vmatmul.mubr.f32.gmra.mxu0 %v462
  %v1005 = vpop.f32.mrf.mxu0
  %v1006 = vadd.f32 %v202, %v1005
  %v1007 = vpop.f32.mrf.mxu0
  %1008 = vmatprep.mubr.f32.mxu0 0.0
  %1009 = vmatmul.mubr.f32.gmra.mxu0 %v465
  %v1010 = vpop.f32.mrf.mxu0
  %v1011 = vadd.f32 %v203, %v1010
  %v1012 = vpop.f32.mrf.mxu0
  %1013 = vmatprep.mubr.f32.mxu0 0.0
  %1014 = vmatmul.mubr.f32.gmra.mxu0 %v468
  %v1015 = vpop.f32.mrf.mxu0
  %v1016 = vadd.f32 %v204, %v1015
  %v1017 = vpop.f32.mrf.mxu0
  %1018 = vmatprep.mubr.f32.mxu0 0.0
  %1019 = vmatmul.mubr.f32.gmra.mxu0 %v471
  %v1020 = vpop.f32.mrf.mxu0
  %v1021 = vadd.f32 %v205, %v1020
  %v1022 = vpop.f32.mrf.mxu0
  %1023 = vmatprep.mubr.f32.mxu0 0.0
  %1024 = vmatmul.mubr.f32.gmra.mxu0 %v474
  %v1025 = vpop.f32.mrf.mxu0
  %v1026 = vadd.f32 %v206, %v1025
  %v1027 = vpop.f32.mrf.mxu0
  %1028 = vmatprep.mubr.f32.mxu0 0.0
  %1029 = vmatmul.mubr.f32.gmra.mxu0 %v477
  %v1030 = vpop.f32.mrf.mxu0
  %v1031 = vadd.f32 %v207, %v1030
  %v1032 = vpop.f32.mrf.mxu0
  %1033 = vmatprep.mubr.f32.mxu0 0.0
  %1034 = vmatmul.mubr.f32.gmra.mxu0 %v480
  %v1035 = vpop.f32.mrf.mxu0
  %v1036 = vadd.f32 %v208, %v1035
  %v1037 = vpop.f32.mrf.mxu0
  %1038 = vmatprep.mubr.f32.mxu0 0.0
  %1039 = vmatmul.mubr.f32.gmra.mxu0 %v483
  %v1040 = vpop.f32.mrf.mxu0
  %v1041 = vadd.f32 %v209, %v1040
  %v1042 = vpop.f32.mrf.mxu0
  %1043 = vmatprep.mubr.f32.mxu0 0.0
  %1044 = vmatmul.mubr.f32.gmra.mxu0 %v486
  %v1045 = vpop.f32.mrf.mxu0
  %v1046 = vadd.f32 %v210, %v1045
  %v1047 = vpop.f32.mrf.mxu0
  %1048 = vmatprep.mubr.f32.mxu0 0.0
  %1049 = vmatmul.mubr.f32.gmra.mxu0 %v489
  %v1050 = vpop.f32.mrf.mxu0
  %v1051 = vadd.f32 %v211, %v1050
  %v1052 = vpop.f32.mrf.mxu0
  %1053 = vmatprep.mubr.f32.mxu0 0.0
  %1054 = vmatmul.mubr.f32.gmra.mxu0 %v492
  %v1055 = vpop.f32.mrf.mxu0
  %v1056 = vadd.f32 %v212, %v1055
  %v1057 = vpop.f32.mrf.mxu0
  %1058 = vmatprep.mubr.f32.mxu0 0.0
  %1059 = vmatmul.mubr.f32.gmra.mxu0 %v495
  %v1060 = vpop.f32.mrf.mxu0
  %v1061 = vadd.f32 %v213, %v1060
  %v1062 = vpop.f32.mrf.mxu0
  %1063 = vmatprep.mubr.f32.mxu0 0.0
  %1064 = vmatmul.mubr.f32.gmra.mxu0 %v498
  %v1065 = vpop.f32.mrf.mxu0
  %v1066 = vadd.f32 %v214, %v1065
  %v1067 = vpop.f32.mrf.mxu0
  %1068 = vmatprep.mubr.f32.mxu0 0.0
  %1069 = vmatmul.mubr.f32.gmra.mxu0 %v501
  %v1070 = vpop.f32.mrf.mxu0
  %v1071 = vadd.f32 %v215, %v1070
  %v1072 = vpop.f32.mrf.mxu0
  %1073 = vmatprep.mubr.f32.mxu0 0.0
  %1074 = vmatmul.mubr.f32.gmra.mxu0 %v504
  %v1075 = vpop.f32.mrf.mxu0
  %v1076 = vadd.f32 %v216, %v1075
  %v1077 = vpop.f32.mrf.mxu0
  %1078 = vmatprep.mubr.f32.mxu0 0.0
  %1079 = vmatmul.mubr.f32.gmra.mxu0 %v507
  %v1080 = vpop.f32.mrf.mxu0
  %v1081 = vadd.f32 %v217, %v1080
  %v1082 = vpop.f32.mrf.mxu0
  %1083 = vmatprep.mubr.f32.mxu0 0.0
  %1084 = vmatmul.mubr.f32.gmra.mxu0 %v510
  %v1085 = vpop.f32.mrf.mxu0
  %v1086 = vadd.f32 %v218, %v1085
  %v1087 = vpop.f32.mrf.mxu0
  %1088 = vmatprep.mubr.f32.mxu0 0.0
  %1089 = vmatmul.mubr.f32.gmra.mxu0 %v513
  %v1090 = vpop.f32.mrf.mxu0
  %v1091 = vadd.f32 %v219, %v1090
  %v1092 = vpop.f32.mrf.mxu0
  %1093 = vmatprep.mubr.f32.mxu0 0.0
  %1094 = vmatmul.mubr.f32.gmra.mxu0 %v516
  %v1095 = vpop.f32.mrf.mxu0
  %v1096 = vadd.f32 %v220, %v1095
  %v1097 = vpop.f32.mrf.mxu0
  %1098 = vmatprep.mubr.f32.mxu0 0.0
  %1099 = vmatmul.mubr.f32.gmra.mxu0 %v519
  %v1100 = vpop.f32.mrf.mxu0
  %v1101 = vadd.f32 %v221, %v1100
  %v1102 = vpop.f32.mrf.mxu0
  %1103 = vmatprep.mubr.f32.mxu0 0.0
  %1104 = vmatmul.mubr.f32.gmra.mxu0 %v522
  %v1105 = vpop.f32.mrf.mxu0
  %v1106 = vadd.f32 %v222, %v1105
  %v1107 = vpop.f32.mrf.mxu0
  %1108 = vmatprep.mubr.f32.mxu0 0.0
  %1109 = vmatmul.mubr.f32.gmra.mxu0 %v525
  %v1110 = vpop.f32.mrf.mxu0
  %v1111 = vadd.f32 %v223, %v1110
  %v1112 = vpop.f32.mrf.mxu0
  %1113 = vmatprep.mubr.f32.mxu0 0.0
  %1114 = vmatmul.mubr.f32.gmra.mxu0 %v528
  %v1115 = vpop.f32.mrf.mxu0
  %v1116 = vadd.f32 %v224, %v1115
  %v1117 = vpop.f32.mrf.mxu0
  %1118 = vmatprep.mubr.f32.mxu0 0.0
  %1119 = vmatmul.mubr.f32.gmra.mxu0 %v531
  %v1120 = vpop.f32.mrf.mxu0
  %v1121 = vadd.f32 %v225, %v1120
  %v1122 = vpop.f32.mrf.mxu0
  %1123 = vmatprep.mubr.f32.mxu0 0.0
  %1124 = vmatmul.mubr.f32.gmra.mxu0 %v534
  %v1125 = vpop.f32.mrf.mxu0
  %v1126 = vadd.f32 %v226, %v1125
  %v1127 = vpop.f32.mrf.mxu0
  %1128 = vmatprep.mubr.f32.mxu0 0.0
  %1129 = vmatmul.mubr.f32.gmra.mxu0 %v537
  %v1130 = vpop.f32.mrf.mxu0
  %v1131 = vadd.f32 %v227, %v1130
  %v1132 = vpop.f32.mrf.mxu0
  %1133 = vmatprep.mubr.f32.mxu0 0.0
  %1134 = vmatmul.mubr.f32.gmra.mxu0 %v540
  %v1135 = vpop.f32.mrf.mxu0
  %v1136 = vadd.f32 %v228, %v1135
  %v1137 = vpop.f32.mrf.mxu0
  %1138 = vmatprep.mubr.f32.mxu0 0.0
  %1139 = vmatmul.mubr.f32.gmra.mxu0 %v543
  %v1140 = vpop.f32.mrf.mxu0
  %v1141 = vadd.f32 %v229, %v1140
  %v1142 = vpop.f32.mrf.mxu0
  %1143 = vmatprep.mubr.f32.mxu0 0.0
  %1144 = vmatmul.mubr.f32.gmra.mxu0 %v546
  %v1145 = vpop.f32.mrf.mxu0
  %v1146 = vadd.f32 %v230, %v1145
  %v1147 = vpop.f32.mrf.mxu0
  %1148 = vmatprep.mubr.f32.mxu0 0.0
  %1149 = vmatmul.mubr.f32.gmra.mxu0 %v549
  %v1150 = vpop.f32.mrf.mxu0
  %v1151 = vadd.f32 %v231, %v1150
  %v1152 = vpop.f32.mrf.mxu0
  %1153 = vmatprep.mubr.f32.mxu0 0.0
  %1154 = vmatmul.mubr.f32.gmra.mxu0 %v552
  %v1155 = vpop.f32.mrf.mxu0
  %v1156 = vadd.f32 %v232, %v1155
  %v1157 = vpop.f32.mrf.mxu0
  %1158 = vmatprep.mubr.f32.mxu0 0.0
  %1159 = vmatmul.mubr.f32.gmra.mxu0 %v555
  %v1160 = vpop.f32.mrf.mxu0
  %v1161 = vadd.f32 %v233, %v1160
  %v1162 = vpop.f32.mrf.mxu0
  %1163 = vmatprep.mubr.f32.mxu0 0.0
  %1164 = vmatmul.mubr.f32.gmra.mxu0 %v558
  %v1165 = vpop.f32.mrf.mxu0
  %v1166 = vadd.f32 %v234, %v1165
  %v1167 = vpop.f32.mrf.mxu0
  %1168 = vdwg.mxu0
  %v1169 = vxor.u32 %v631, 2147483648
  %v1170 = vxor.u32 %v636, 2147483648
  %v1171 = vxor.u32 %v641, 2147483648
  %v1172 = vxor.u32 %v646, 2147483648
  %v1173 = vxor.u32 %v651, 2147483648
  %v1174 = vxor.u32 %v656, 2147483648
  %v1175 = vxor.u32 %v661, 2147483648
  %v1176 = vxor.u32 %v666, 2147483648
  %v1177 = vxor.u32 %v671, 2147483648
  %v1178 = vxor.u32 %v676, 2147483648
  %v1179 = vxor.u32 %v681, 2147483648
  %v1180 = vxor.u32 %v686, 2147483648
  %v1181 = vxor.u32 %v691, 2147483648
  %v1182 = vxor.u32 %v696, 2147483648
  %v1183 = vxor.u32 %v701, 2147483648
  %v1184 = vxor.u32 %v706, 2147483648
  %v1185 = vxor.u32 %v711, 2147483648
  %v1186 = vxor.u32 %v716, 2147483648
  %v1187 = vxor.u32 %v721, 2147483648
  %v1188 = vxor.u32 %v726, 2147483648
  %v1189 = vxor.u32 %v731, 2147483648
  %v1190 = vxor.u32 %v736, 2147483648
  %v1191 = vxor.u32 %v741, 2147483648
  %v1192 = vxor.u32 %v746, 2147483648
  %v1193 = vxor.u32 %v751, 2147483648
  %v1194 = vxor.u32 %v756, 2147483648
  %v1195 = vxor.u32 %v761, 2147483648
  %v1196 = vxor.u32 %v766, 2147483648
  %v1197 = vxor.u32 %v771, 2147483648
  %v1198 = vxor.u32 %v776, 2147483648
  %v1199 = vxor.u32 %v781, 2147483648
  %v1200 = vxor.u32 %v786, 2147483648
  %v1201 = vxor.u32 %v791, 2147483648
  %v1202 = vxor.u32 %v796, 2147483648
  %v1203 = vxor.u32 %v801, 2147483648
  %v1204 = vxor.u32 %v806, 2147483648
  %v1205 = vxor.u32 %v811, 2147483648
  %v1206 = vxor.u32 %v816, 2147483648
  %v1207 = vxor.u32 %v821, 2147483648
  %v1208 = vxor.u32 %v826, 2147483648
  %v1209 = vxor.u32 %v831, 2147483648
  %v1210 = vxor.u32 %v836, 2147483648
  %v1211 = vxor.u32 %v841, 2147483648
  %v1212 = vxor.u32 %v846, 2147483648
  %v1213 = vxor.u32 %v851, 2147483648
  %v1214 = vxor.u32 %v856, 2147483648
  %v1215 = vxor.u32 %v861, 2147483648
  %v1216 = vxor.u32 %v866, 2147483648
  %v1217 = vxor.u32 %v871, 2147483648
  %v1218 = vxor.u32 %v876, 2147483648
  %v1219 = vxor.u32 %v881, 2147483648
  %v1220 = vxor.u32 %v886, 2147483648
  %v1221 = vxor.u32 %v891, 2147483648
  %v1222 = vxor.u32 %v896, 2147483648
  %v1223 = vxor.u32 %v901, 2147483648
  %v1224 = vxor.u32 %v906, 2147483648
  %v1225 = vxor.u32 %v911, 2147483648
  %v1226 = vxor.u32 %v916, 2147483648
  %v1227 = vxor.u32 %v921, 2147483648
  %v1228 = vxor.u32 %v926, 2147483648
  %v1229 = vxor.u32 %v931, 2147483648
  %v1230 = vxor.u32 %v936, 2147483648
  %v1231 = vxor.u32 %v941, 2147483648
  %v1232 = vxor.u32 %v946, 2147483648
  %v1233 = vxor.u32 %v951, 2147483648
  %v1234 = vxor.u32 %v956, 2147483648
  %v1235 = vxor.u32 %v961, 2147483648
  %v1236 = vxor.u32 %v966, 2147483648
  %v1237 = vxor.u32 %v971, 2147483648
  %v1238 = vxor.u32 %v976, 2147483648
  %v1239 = vxor.u32 %v981, 2147483648
  %v1240 = vxor.u32 %v986, 2147483648
  %v1241 = vxor.u32 %v991, 2147483648
  %v1242 = vxor.u32 %v996, 2147483648
  %v1243 = vxor.u32 %v1001, 2147483648
  %v1244 = vxor.u32 %v1006, 2147483648
  %v1245 = vxor.u32 %v1011, 2147483648
  %v1246 = vxor.u32 %v1016, 2147483648
  %v1247 = vxor.u32 %v1021, 2147483648
  %v1248 = vxor.u32 %v1026, 2147483648
  %v1249 = vxor.u32 %v1031, 2147483648
  %v1250 = vxor.u32 %v1036, 2147483648
  %v1251 = vxor.u32 %v1041, 2147483648
  %v1252 = vxor.u32 %v1046, 2147483648
  %v1253 = vxor.u32 %v1051, 2147483648
  %v1254 = vxor.u32 %v1056, 2147483648
  %v1255 = vxor.u32 %v1061, 2147483648
  %v1256 = vxor.u32 %v1066, 2147483648
  %v1257 = vxor.u32 %v1071, 2147483648
  %v1258 = vxor.u32 %v1076, 2147483648
  %v1259 = vxor.u32 %v1081, 2147483648
  %v1260 = vxor.u32 %v1086, 2147483648
  %v1261 = vxor.u32 %v1091, 2147483648
  %v1262 = vxor.u32 %v1096, 2147483648
  %v1263 = vxor.u32 %v1101, 2147483648
  %v1264 = vxor.u32 %v1106, 2147483648
  %v1265 = vxor.u32 %v1111, 2147483648
  %v1266 = vxor.u32 %v1116, 2147483648
  %v1267 = vxor.u32 %v1121, 2147483648
  %v1268 = vxor.u32 %v1126, 2147483648
  %v1269 = vxor.u32 %v1131, 2147483648
  %v1270 = vxor.u32 %v1136, 2147483648
  %v1271 = vxor.u32 %v1141, 2147483648
  %v1272 = vxor.u32 %v1146, 2147483648
  %v1273 = vxor.u32 %v1151, 2147483648
  %v1274 = vxor.u32 %v1156, 2147483648
  %v1275 = vxor.u32 %v1161, 2147483648
  %v1276 = vxor.u32 %v1166, 2147483648
  %v1277 = vmul.f32 %v1169, 1.442695
  %v1278 = vpow.pop %v1277
  %v1279 = vmul.f32 %v1170, 1.442695
  %v1280 = vpow.pop %v1279
  %v1281 = vmul.f32 %v1171, 1.442695
  %v1282 = vpow.pop %v1281
  %v1283 = vmul.f32 %v1172, 1.442695
  %v1284 = vpow.pop %v1283
  %v1285 = vmul.f32 %v1173, 1.442695
  %v1286 = vpow.pop %v1285
  %v1287 = vmul.f32 %v1174, 1.442695
  %v1288 = vpow.pop %v1287
  %v1289 = vmul.f32 %v1175, 1.442695
  %v1290 = vpow.pop %v1289
  %v1291 = vmul.f32 %v1176, 1.442695
  %v1292 = vpow.pop %v1291
  %v1293 = vmul.f32 %v1177, 1.442695
  %v1294 = vpow.pop %v1293
  %v1295 = vmul.f32 %v1178, 1.442695
  %v1296 = vpow.pop %v1295
  %v1297 = vmul.f32 %v1179, 1.442695
  %v1298 = vpow.pop %v1297
  %v1299 = vmul.f32 %v1180, 1.442695
  %v1300 = vpow.pop %v1299
  %v1301 = vmul.f32 %v1181, 1.442695
  %v1302 = vpow.pop %v1301
  %v1303 = vmul.f32 %v1182, 1.442695
  %v1304 = vpow.pop %v1303
  %v1305 = vmul.f32 %v1183, 1.442695
  %v1306 = vpow.pop %v1305
  %v1307 = vmul.f32 %v1184, 1.442695
  %v1308 = vpow.pop %v1307
  %v1309 = vmul.f32 %v1185, 1.442695
  %v1310 = vpow.pop %v1309
  %v1311 = vmul.f32 %v1186, 1.442695
  %v1312 = vpow.pop %v1311
  %v1313 = vmul.f32 %v1187, 1.442695
  %v1314 = vpow.pop %v1313
  %v1315 = vmul.f32 %v1188, 1.442695
  %v1316 = vpow.pop %v1315
  %v1317 = vmul.f32 %v1189, 1.442695
  %v1318 = vpow.pop %v1317
  %v1319 = vmul.f32 %v1190, 1.442695
  %v1320 = vpow.pop %v1319
  %v1321 = vmul.f32 %v1191, 1.442695
  %v1322 = vpow.pop %v1321
  %v1323 = vmul.f32 %v1192, 1.442695
  %v1324 = vpow.pop %v1323
  %v1325 = vmul.f32 %v1193, 1.442695
  %v1326 = vpow.pop %v1325
  %v1327 = vmul.f32 %v1194, 1.442695
  %v1328 = vpow.pop %v1327
  %v1329 = vmul.f32 %v1195, 1.442695
  %v1330 = vpow.pop %v1329
  %v1331 = vmul.f32 %v1196, 1.442695
  %v1332 = vpow.pop %v1331
  %v1333 = vmul.f32 %v1197, 1.442695
  %v1334 = vpow.pop %v1333
  %v1335 = vmul.f32 %v1198, 1.442695
  %v1336 = vpow.pop %v1335
  %v1337 = vmul.f32 %v1199, 1.442695
  %v1338 = vpow.pop %v1337
  %v1339 = vmul.f32 %v1200, 1.442695
  %v1340 = vpow.pop %v1339
  %v1341 = vmul.f32 %v1201, 1.442695
  %v1342 = vpow.pop %v1341
  %v1343 = vmul.f32 %v1202, 1.442695
  %v1344 = vpow.pop %v1343
  %v1345 = vmul.f32 %v1203, 1.442695
  %v1346 = vpow.pop %v1345
  %v1347 = vmul.f32 %v1204, 1.442695
  %v1348 = vpow.pop %v1347
  %v1349 = vmul.f32 %v1205, 1.442695
  %v1350 = vpow.pop %v1349
  %v1351 = vmul.f32 %v1206, 1.442695
  %v1352 = vpow.pop %v1351
  %v1353 = vmul.f32 %v1207, 1.442695
  %v1354 = vpow.pop %v1353
  %v1355 = vmul.f32 %v1208, 1.442695
  %v1356 = vpow.pop %v1355
  %v1357 = vmul.f32 %v1209, 1.442695
  %v1358 = vpow.pop %v1357
  %v1359 = vmul.f32 %v1210, 1.442695
  %v1360 = vpow.pop %v1359
  %v1361 = vmul.f32 %v1211, 1.442695
  %v1362 = vpow.pop %v1361
  %v1363 = vmul.f32 %v1212, 1.442695
  %v1364 = vpow.pop %v1363
  %v1365 = vmul.f32 %v1213, 1.442695
  %v1366 = vpow.pop %v1365
  %v1367 = vmul.f32 %v1214, 1.442695
  %v1368 = vpow.pop %v1367
  %v1369 = vmul.f32 %v1215, 1.442695
  %v1370 = vpow.pop %v1369
  %v1371 = vmul.f32 %v1216, 1.442695
  %v1372 = vpow.pop %v1371
  %v1373 = vmul.f32 %v1217, 1.442695
  %v1374 = vpow.pop %v1373
  %v1375 = vmul.f32 %v1218, 1.442695
  %v1376 = vpow.pop %v1375
  %v1377 = vmul.f32 %v1219, 1.442695
  %v1378 = vpow.pop %v1377
  %v1379 = vmul.f32 %v1220, 1.442695
  %v1380 = vpow.pop %v1379
  %v1381 = vmul.f32 %v1221, 1.442695
  %v1382 = vpow.pop %v1381
  %v1383 = vmul.f32 %v1222, 1.442695
  %v1384 = vpow.pop %v1383
  %v1385 = vmul.f32 %v1223, 1.442695
  %v1386 = vpow.pop %v1385
  %v1387 = vmul.f32 %v1224, 1.442695
  %v1388 = vpow.pop %v1387
  %v1389 = vmul.f32 %v1225, 1.442695
  %v1390 = vpow.pop %v1389
  %v1391 = vmul.f32 %v1226, 1.442695
  %v1392 = vpow.pop %v1391
  %v1393 = vmul.f32 %v1227, 1.442695
  %v1394 = vpow.pop %v1393
  %v1395 = vmul.f32 %v1228, 1.442695
  %v1396 = vpow.pop %v1395
  %v1397 = vmul.f32 %v1229, 1.442695
  %v1398 = vpow.pop %v1397
  %v1399 = vmul.f32 %v1230, 1.442695
  %v1400 = vpow.pop %v1399
  %v1401 = vmul.f32 %v1231, 1.442695
  %v1402 = vpow.pop %v1401
  %v1403 = vmul.f32 %v1232, 1.442695
  %v1404 = vpow.pop %v1403
  %v1405 = vmul.f32 %v1233, 1.442695
  %v1406 = vpow.pop %v1405
  %v1407 = vmul.f32 %v1234, 1.442695
  %v1408 = vpow.pop %v1407
  %v1409 = vmul.f32 %v1235, 1.442695
  %v1410 = vpow.pop %v1409
  %v1411 = vmul.f32 %v1236, 1.442695
  %v1412 = vpow.pop %v1411
  %v1413 = vmul.f32 %v1237, 1.442695
  %v1414 = vpow.pop %v1413
  %v1415 = vmul.f32 %v1238, 1.442695
  %v1416 = vpow.pop %v1415
  %v1417 = vmul.f32 %v1239, 1.442695
  %v1418 = vpow.pop %v1417
  %v1419 = vmul.f32 %v1240, 1.442695
  %v1420 = vpow.pop %v1419
  %v1421 = vmul.f32 %v1241, 1.442695
  %v1422 = vpow.pop %v1421
  %v1423 = vmul.f32 %v1242, 1.442695
  %v1424 = vpow.pop %v1423
  %v1425 = vmul.f32 %v1243, 1.442695
  %v1426 = vpow.pop %v1425
  %v1427 = vmul.f32 %v1244, 1.442695
  %v1428 = vpow.pop %v1427
  %v1429 = vmul.f32 %v1245, 1.442695
  %v1430 = vpow.pop %v1429
  %v1431 = vmul.f32 %v1246, 1.442695
  %v1432 = vpow.pop %v1431
  %v1433 = vmul.f32 %v1247, 1.442695
  %v1434 = vpow.pop %v1433
  %v1435 = vmul.f32 %v1248, 1.442695
  %v1436 = vpow.pop %v1435
  %v1437 = vmul.f32 %v1249, 1.442695
  %v1438 = vpow.pop %v1437
  %v1439 = vmul.f32 %v1250, 1.442695
  %v1440 = vpow.pop %v1439
  %v1441 = vmul.f32 %v1251, 1.442695
  %v1442 = vpow.pop %v1441
  %v1443 = vmul.f32 %v1252, 1.442695
  %v1444 = vpow.pop %v1443
  %v1445 = vmul.f32 %v1253, 1.442695
  %v1446 = vpow.pop %v1445
  %v1447 = vmul.f32 %v1254, 1.442695
  %v1448 = vpow.pop %v1447
  %v1449 = vmul.f32 %v1255, 1.442695
  %v1450 = vpow.pop %v1449
  %v1451 = vmul.f32 %v1256, 1.442695
  %v1452 = vpow.pop %v1451
  %v1453 = vmul.f32 %v1257, 1.442695
  %v1454 = vpow.pop %v1453
  %v1455 = vmul.f32 %v1258, 1.442695
  %v1456 = vpow.pop %v1455
  %v1457 = vmul.f32 %v1259, 1.442695
  %v1458 = vpow.pop %v1457
  %v1459 = vmul.f32 %v1260, 1.442695
  %v1460 = vpow.pop %v1459
  %v1461 = vmul.f32 %v1261, 1.442695
  %v1462 = vpow.pop %v1461
  %v1463 = vmul.f32 %v1262, 1.442695
  %v1464 = vpow.pop %v1463
  %v1465 = vmul.f32 %v1263, 1.442695
  %v1466 = vpow.pop %v1465
  %v1467 = vmul.f32 %v1264, 1.442695
  %v1468 = vpow.pop %v1467
  %v1469 = vmul.f32 %v1265, 1.442695
  %v1470 = vpow.pop %v1469
  %v1471 = vmul.f32 %v1266, 1.442695
  %v1472 = vpow.pop %v1471
  %v1473 = vmul.f32 %v1267, 1.442695
  %v1474 = vpow.pop %v1473
  %v1475 = vmul.f32 %v1268, 1.442695
  %v1476 = vpow.pop %v1475
  %v1477 = vmul.f32 %v1269, 1.442695
  %v1478 = vpow.pop %v1477
  %v1479 = vmul.f32 %v1270, 1.442695
  %v1480 = vpow.pop %v1479
  %v1481 = vmul.f32 %v1271, 1.442695
  %v1482 = vpow.pop %v1481
  %v1483 = vmul.f32 %v1272, 1.442695
  %v1484 = vpow.pop %v1483
  %v1485 = vmul.f32 %v1273, 1.442695
  %v1486 = vpow.pop %v1485
  %v1487 = vmul.f32 %v1274, 1.442695
  %v1488 = vpow.pop %v1487
  %v1489 = vmul.f32 %v1275, 1.442695
  %v1490 = vpow.pop %v1489
  %v1491 = vmul.f32 %v1276, 1.442695
  %v1492 = vpow.pop %v1491
  %v1493 = vadd.f32 %v1278, 1.0
  %v1494 = vadd.f32 %v1280, 1.0
  %v1495 = vadd.f32 %v1282, 1.0
  %v1496 = vadd.f32 %v1284, 1.0
  %v1497 = vadd.f32 %v1286, 1.0
  %v1498 = vadd.f32 %v1288, 1.0
  %v1499 = vadd.f32 %v1290, 1.0
  %v1500 = vadd.f32 %v1292, 1.0
  %v1501 = vadd.f32 %v1294, 1.0
  %v1502 = vadd.f32 %v1296, 1.0
  %v1503 = vadd.f32 %v1298, 1.0
  %v1504 = vadd.f32 %v1300, 1.0
  %v1505 = vadd.f32 %v1302, 1.0
  %v1506 = vadd.f32 %v1304, 1.0
  %v1507 = vadd.f32 %v1306, 1.0
  %v1508 = vadd.f32 %v1308, 1.0
  %v1509 = vadd.f32 %v1310, 1.0
  %v1510 = vadd.f32 %v1312, 1.0
  %v1511 = vadd.f32 %v1314, 1.0
  %v1512 = vadd.f32 %v1316, 1.0
  %v1513 = vadd.f32 %v1318, 1.0
  %v1514 = vadd.f32 %v1320, 1.0
  %v1515 = vadd.f32 %v1322, 1.0
  %v1516 = vadd.f32 %v1324, 1.0
  %v1517 = vadd.f32 %v1326, 1.0
  %v1518 = vadd.f32 %v1328, 1.0
  %v1519 = vadd.f32 %v1330, 1.0
  %v1520 = vadd.f32 %v1332, 1.0
  %v1521 = vadd.f32 %v1334, 1.0
  %v1522 = vadd.f32 %v1336, 1.0
  %v1523 = vadd.f32 %v1338, 1.0
  %v1524 = vadd.f32 %v1340, 1.0
  %v1525 = vadd.f32 %v1342, 1.0
  %v1526 = vadd.f32 %v1344, 1.0
  %v1527 = vadd.f32 %v1346, 1.0
  %v1528 = vadd.f32 %v1348, 1.0
  %v1529 = vadd.f32 %v1350, 1.0
  %v1530 = vadd.f32 %v1352, 1.0
  %v1531 = vadd.f32 %v1354, 1.0
  %v1532 = vadd.f32 %v1356, 1.0
  %v1533 = vadd.f32 %v1358, 1.0
  %v1534 = vadd.f32 %v1360, 1.0
  %v1535 = vadd.f32 %v1362, 1.0
  %v1536 = vadd.f32 %v1364, 1.0
  %v1537 = vadd.f32 %v1366, 1.0
  %v1538 = vadd.f32 %v1368, 1.0
  %v1539 = vadd.f32 %v1370, 1.0
  %v1540 = vadd.f32 %v1372, 1.0
  %v1541 = vadd.f32 %v1374, 1.0
  %v1542 = vadd.f32 %v1376, 1.0
  %v1543 = vadd.f32 %v1378, 1.0
  %v1544 = vadd.f32 %v1380, 1.0
  %v1545 = vadd.f32 %v1382, 1.0
  %v1546 = vadd.f32 %v1384, 1.0
  %v1547 = vadd.f32 %v1386, 1.0
  %v1548 = vadd.f32 %v1388, 1.0
  %v1549 = vadd.f32 %v1390, 1.0
  %v1550 = vadd.f32 %v1392, 1.0
  %v1551 = vadd.f32 %v1394, 1.0
  %v1552 = vadd.f32 %v1396, 1.0
  %v1553 = vadd.f32 %v1398, 1.0
  %v1554 = vadd.f32 %v1400, 1.0
  %v1555 = vadd.f32 %v1402, 1.0
  %v1556 = vadd.f32 %v1404, 1.0
  %v1557 = vadd.f32 %v1406, 1.0
  %v1558 = vadd.f32 %v1408, 1.0
  %v1559 = vadd.f32 %v1410, 1.0
  %v1560 = vadd.f32 %v1412, 1.0
  %v1561 = vadd.f32 %v1414, 1.0
  %v1562 = vadd.f32 %v1416, 1.0
  %v1563 = vadd.f32 %v1418, 1.0
  %v1564 = vadd.f32 %v1420, 1.0
  %v1565 = vadd.f32 %v1422, 1.0
  %v1566 = vadd.f32 %v1424, 1.0
  %v1567 = vadd.f32 %v1426, 1.0
  %v1568 = vadd.f32 %v1428, 1.0
  %v1569 = vadd.f32 %v1430, 1.0
  %v1570 = vadd.f32 %v1432, 1.0
  %v1571 = vadd.f32 %v1434, 1.0
  %v1572 = vadd.f32 %v1436, 1.0
  %v1573 = vadd.f32 %v1438, 1.0
  %v1574 = vadd.f32 %v1440, 1.0
  %v1575 = vadd.f32 %v1442, 1.0
  %v1576 = vadd.f32 %v1444, 1.0
  %v1577 = vadd.f32 %v1446, 1.0
  %v1578 = vadd.f32 %v1448, 1.0
  %v1579 = vadd.f32 %v1450, 1.0
  %v1580 = vadd.f32 %v1452, 1.0
  %v1581 = vadd.f32 %v1454, 1.0
  %v1582 = vadd.f32 %v1456, 1.0
  %v1583 = vadd.f32 %v1458, 1.0
  %v1584 = vadd.f32 %v1460, 1.0
  %v1585 = vadd.f32 %v1462, 1.0
  %v1586 = vadd.f32 %v1464, 1.0
  %v1587 = vadd.f32 %v1466, 1.0
  %v1588 = vadd.f32 %v1468, 1.0
  %v1589 = vadd.f32 %v1470, 1.0
  %v1590 = vadd.f32 %v1472, 1.0
  %v1591 = vadd.f32 %v1474, 1.0
  %v1592 = vadd.f32 %v1476, 1.0
  %v1593 = vadd.f32 %v1478, 1.0
  %v1594 = vadd.f32 %v1480, 1.0
  %v1595 = vadd.f32 %v1482, 1.0
  %v1596 = vadd.f32 %v1484, 1.0
  %v1597 = vadd.f32 %v1486, 1.0
  %v1598 = vadd.f32 %v1488, 1.0
  %v1599 = vadd.f32 %v1490, 1.0
  %v1600 = vadd.f32 %v1492, 1.0
  %v1601 = vrcp.pop %v1493
  %v1602 = vmul.f32 1.0, %v1601
  %v1603 = vrcp.pop %v1494
  %v1604 = vmul.f32 1.0, %v1603
  %v1605 = vrcp.pop %v1495
  %v1606 = vmul.f32 1.0, %v1605
  %v1607 = vrcp.pop %v1496
  %v1608 = vmul.f32 1.0, %v1607
  %v1609 = vrcp.pop %v1497
  %v1610 = vmul.f32 1.0, %v1609
  %v1611 = vrcp.pop %v1498
  %v1612 = vmul.f32 1.0, %v1611
  %v1613 = vrcp.pop %v1499
  %v1614 = vmul.f32 1.0, %v1613
  %v1615 = vrcp.pop %v1500
  %v1616 = vmul.f32 1.0, %v1615
  %v1617 = vrcp.pop %v1501
  %v1618 = vmul.f32 1.0, %v1617
  %v1619 = vrcp.pop %v1502
  %v1620 = vmul.f32 1.0, %v1619
  %v1621 = vrcp.pop %v1503
  %v1622 = vmul.f32 1.0, %v1621
  %v1623 = vrcp.pop %v1504
  %v1624 = vmul.f32 1.0, %v1623
  %v1625 = vrcp.pop %v1505
  %v1626 = vmul.f32 1.0, %v1625
  %v1627 = vrcp.pop %v1506
  %v1628 = vmul.f32 1.0, %v1627
  %v1629 = vrcp.pop %v1507
  %v1630 = vmul.f32 1.0, %v1629
  %v1631 = vrcp.pop %v1508
  %v1632 = vmul.f32 1.0, %v1631
  %v1633 = vrcp.pop %v1509
  %v1634 = vmul.f32 1.0, %v1633
  %v1635 = vrcp.pop %v1510
  %v1636 = vmul.f32 1.0, %v1635
  %v1637 = vrcp.pop %v1511
  %v1638 = vmul.f32 1.0, %v1637
  %v1639 = vrcp.pop %v1512
  %v1640 = vmul.f32 1.0, %v1639
  %v1641 = vrcp.pop %v1513
  %v1642 = vmul.f32 1.0, %v1641
  %v1643 = vrcp.pop %v1514
  %v1644 = vmul.f32 1.0, %v1643
  %v1645 = vrcp.pop %v1515
  %v1646 = vmul.f32 1.0, %v1645
  %v1647 = vrcp.pop %v1516
  %v1648 = vmul.f32 1.0, %v1647
  %v1649 = vrcp.pop %v1517
  %v1650 = vmul.f32 1.0, %v1649
  %v1651 = vrcp.pop %v1518
  %v1652 = vmul.f32 1.0, %v1651
  %v1653 = vrcp.pop %v1519
  %v1654 = vmul.f32 1.0, %v1653
  %v1655 = vrcp.pop %v1520
  %v1656 = vmul.f32 1.0, %v1655
  %v1657 = vrcp.pop %v1521
  %v1658 = vmul.f32 1.0, %v1657
  %v1659 = vrcp.pop %v1522
  %v1660 = vmul.f32 1.0, %v1659
  %v1661 = vrcp.pop %v1523
  %v1662 = vmul.f32 1.0, %v1661
  %v1663 = vrcp.pop %v1524
  %v1664 = vmul.f32 1.0, %v1663
  %v1665 = vrcp.pop %v1525
  %v1666 = vmul.f32 1.0, %v1665
  %v1667 = vrcp.pop %v1526
  %v1668 = vmul.f32 1.0, %v1667
  %v1669 = vrcp.pop %v1527
  %v1670 = vmul.f32 1.0, %v1669
  %v1671 = vrcp.pop %v1528
  %v1672 = vmul.f32 1.0, %v1671
  %v1673 = vrcp.pop %v1529
  %v1674 = vmul.f32 1.0, %v1673
  %v1675 = vrcp.pop %v1530
  %v1676 = vmul.f32 1.0, %v1675
  %v1677 = vrcp.pop %v1531
  %v1678 = vmul.f32 1.0, %v1677
  %v1679 = vrcp.pop %v1532
  %v1680 = vmul.f32 1.0, %v1679
  %v1681 = vrcp.pop %v1533
  %v1682 = vmul.f32 1.0, %v1681
  %v1683 = vrcp.pop %v1534
  %v1684 = vmul.f32 1.0, %v1683
  %v1685 = vrcp.pop %v1535
  %v1686 = vmul.f32 1.0, %v1685
  %v1687 = vrcp.pop %v1536
  %v1688 = vmul.f32 1.0, %v1687
  %v1689 = vrcp.pop %v1537
  %v1690 = vmul.f32 1.0, %v1689
  %v1691 = vrcp.pop %v1538
  %v1692 = vmul.f32 1.0, %v1691
  %v1693 = vrcp.pop %v1539
  %v1694 = vmul.f32 1.0, %v1693
  %v1695 = vrcp.pop %v1540
  %v1696 = vmul.f32 1.0, %v1695
  %v1697 = vrcp.pop %v1541
  %v1698 = vmul.f32 1.0, %v1697
  %v1699 = vrcp.pop %v1542
  %v1700 = vmul.f32 1.0, %v1699
  %v1701 = vrcp.pop %v1543
  %v1702 = vmul.f32 1.0, %v1701
  %v1703 = vrcp.pop %v1544
  %v1704 = vmul.f32 1.0, %v1703
  %v1705 = vrcp.pop %v1545
  %v1706 = vmul.f32 1.0, %v1705
  %v1707 = vrcp.pop %v1546
  %v1708 = vmul.f32 1.0, %v1707
  %v1709 = vrcp.pop %v1547
  %v1710 = vmul.f32 1.0, %v1709
  %v1711 = vrcp.pop %v1548
  %v1712 = vmul.f32 1.0, %v1711
  %v1713 = vrcp.pop %v1549
  %v1714 = vmul.f32 1.0, %v1713
  %v1715 = vrcp.pop %v1550
  %v1716 = vmul.f32 1.0, %v1715
  %v1717 = vrcp.pop %v1551
  %v1718 = vmul.f32 1.0, %v1717
  %v1719 = vrcp.pop %v1552
  %v1720 = vmul.f32 1.0, %v1719
  %v1721 = vrcp.pop %v1553
  %v1722 = vmul.f32 1.0, %v1721
  %v1723 = vrcp.pop %v1554
  %v1724 = vmul.f32 1.0, %v1723
  %v1725 = vrcp.pop %v1555
  %v1726 = vmul.f32 1.0, %v1725
  %v1727 = vrcp.pop %v1556
  %v1728 = vmul.f32 1.0, %v1727
  %v1729 = vrcp.pop %v1557
  %v1730 = vmul.f32 1.0, %v1729
  %v1731 = vrcp.pop %v1558
  %v1732 = vmul.f32 1.0, %v1731
  %v1733 = vrcp.pop %v1559
  %v1734 = vmul.f32 1.0, %v1733
  %v1735 = vrcp.pop %v1560
  %v1736 = vmul.f32 1.0, %v1735
  %v1737 = vrcp.pop %v1561
  %v1738 = vmul.f32 1.0, %v1737
  %v1739 = vrcp.pop %v1562
  %v1740 = vmul.f32 1.0, %v1739
  %v1741 = vrcp.pop %v1563
  %v1742 = vmul.f32 1.0, %v1741
  %v1743 = vrcp.pop %v1564
  %v1744 = vmul.f32 1.0, %v1743
  %v1745 = vrcp.pop %v1565
  %v1746 = vmul.f32 1.0, %v1745
  %v1747 = vrcp.pop %v1566
  %v1748 = vmul.f32 1.0, %v1747
  %v1749 = vrcp.pop %v1567
  %v1750 = vmul.f32 1.0, %v1749
  %v1751 = vrcp.pop %v1568
  %v1752 = vmul.f32 1.0, %v1751
  %v1753 = vrcp.pop %v1569
  %v1754 = vmul.f32 1.0, %v1753
  %v1755 = vrcp.pop %v1570
  %v1756 = vmul.f32 1.0, %v1755
  %v1757 = vrcp.pop %v1571
  %v1758 = vmul.f32 1.0, %v1757
  %v1759 = vrcp.pop %v1572
  %v1760 = vmul.f32 1.0, %v1759
  %v1761 = vrcp.pop %v1573
  %v1762 = vmul.f32 1.0, %v1761
  %v1763 = vrcp.pop %v1574
  %v1764 = vmul.f32 1.0, %v1763
  %v1765 = vrcp.pop %v1575
  %v1766 = vmul.f32 1.0, %v1765
  %v1767 = vrcp.pop %v1576
  %v1768 = vmul.f32 1.0, %v1767
  %v1769 = vrcp.pop %v1577
  %v1770 = vmul.f32 1.0, %v1769
  %v1771 = vrcp.pop %v1578
  %v1772 = vmul.f32 1.0, %v1771
  %v1773 = vrcp.pop %v1579
  %v1774 = vmul.f32 1.0, %v1773
  %v1775 = vrcp.pop %v1580
  %v1776 = vmul.f32 1.0, %v1775
  %v1777 = vrcp.pop %v1581
  %v1778 = vmul.f32 1.0, %v1777
  %v1779 = vrcp.pop %v1582
  %v1780 = vmul.f32 1.0, %v1779
  %v1781 = vrcp.pop %v1583
  %v1782 = vmul.f32 1.0, %v1781
  %v1783 = vrcp.pop %v1584
  %v1784 = vmul.f32 1.0, %v1783
  %v1785 = vrcp.pop %v1585
  %v1786 = vmul.f32 1.0, %v1785
  %v1787 = vrcp.pop %v1586
  %v1788 = vmul.f32 1.0, %v1787
  %v1789 = vrcp.pop %v1587
  %v1790 = vmul.f32 1.0, %v1789
  %v1791 = vrcp.pop %v1588
  %v1792 = vmul.f32 1.0, %v1791
  %v1793 = vrcp.pop %v1589
  %v1794 = vmul.f32 1.0, %v1793
  %v1795 = vrcp.pop %v1590
  %v1796 = vmul.f32 1.0, %v1795
  %v1797 = vrcp.pop %v1591
  %v1798 = vmul.f32 1.0, %v1797
  %v1799 = vrcp.pop %v1592
  %v1800 = vmul.f32 1.0, %v1799
  %v1801 = vrcp.pop %v1593
  %v1802 = vmul.f32 1.0, %v1801
  %v1803 = vrcp.pop %v1594
  %v1804 = vmul.f32 1.0, %v1803
  %v1805 = vrcp.pop %v1595
  %v1806 = vmul.f32 1.0, %v1805
  %v1807 = vrcp.pop %v1596
  %v1808 = vmul.f32 1.0, %v1807
  %v1809 = vrcp.pop %v1597
  %v1810 = vmul.f32 1.0, %v1809
  %v1811 = vrcp.pop %v1598
  %v1812 = vmul.f32 1.0, %v1811
  %v1813 = vrcp.pop %v1599
  %v1814 = vmul.f32 1.0, %v1813
  %v1815 = vrcp.pop %v1600
  %v1816 = vmul.f32 1.0, %v1815
  %vm1817 = vcmask 7168
  %1818 = vst.msk [vmem:[%s3] sm:$0xff] %vm1817, %v1602
  %1819 = vst.msk [vmem:[%s3 + $0x8] sm:$0xff] %vm1817, %v1604
  %1820 = vst.msk [vmem:[%s3 + $0x10] sm:$0xff] %vm1817, %v1606
  %1821 = vst.msk [vmem:[%s3 + $0x18] sm:$0xff] %vm1817, %v1608
  %1822 = vst.msk [vmem:[%s3 + $0x20] sm:$0xff] %vm1817, %v1610
  %1823 = vst.msk [vmem:[%s3 + $0x28] sm:$0xff] %vm1817, %v1612
  %1824 = vst.msk [vmem:[%s3 + $0x30] sm:$0xff] %vm1817, %v1614
  %1825 = vst.msk [vmem:[%s3 + $0x38] sm:$0xff] %vm1817, %v1616
  %1826 = vst.msk [vmem:[%s3 + $0x40] sm:$0xff] %vm1817, %v1618
  %1827 = vst.msk [vmem:[%s3 + $0x48] sm:$0xff] %vm1817, %v1620
  %1828 = vst.msk [vmem:[%s3 + $0x50] sm:$0xff] %vm1817, %v1622
  %1829 = vst.msk [vmem:[%s3 + $0x58] sm:$0xff] %vm1817, %v1624
  %1830 = vst.msk [vmem:[%s3 + $0x60] sm:$0xff] %vm1817, %v1626
  %1831 = vst.msk [vmem:[%s3 + $0x68] sm:$0xff] %vm1817, %v1628
  %1832 = vst.msk [vmem:[%s3 + $0x70] sm:$0xff] %vm1817, %v1630
  %1833 = vst.msk [vmem:[%s3 + $0x78] sm:$0xff] %vm1817, %v1632
  %1834 = vst.msk [vmem:[%s3 + $0x80] sm:$0xff] %vm1817, %v1634
  %1835 = vst.msk [vmem:[%s3 + $0x88] sm:$0xff] %vm1817, %v1636
  %1836 = vst.msk [vmem:[%s3 + $0x90] sm:$0xff] %vm1817, %v1638
  %1837 = vst.msk [vmem:[%s3 + $0x98] sm:$0xff] %vm1817, %v1640
  %1838 = vst.msk [vmem:[%s3 + $0xa0] sm:$0xff] %vm1817, %v1642
  %1839 = vst.msk [vmem:[%s3 + $0xa8] sm:$0xff] %vm1817, %v1644
  %1840 = vst.msk [vmem:[%s3 + $0xb0] sm:$0xff] %vm1817, %v1646
  %1841 = vst.msk [vmem:[%s3 + $0xb8] sm:$0xff] %vm1817, %v1648
  %1842 = vst.msk [vmem:[%s3 + $0xc0] sm:$0xff] %vm1817, %v1650
  %1843 = vst.msk [vmem:[%s3 + $0xc8] sm:$0xff] %vm1817, %v1652
  %1844 = vst.msk [vmem:[%s3 + $0xd0] sm:$0xff] %vm1817, %v1654
  %1845 = vst.msk [vmem:[%s3 + $0xd8] sm:$0xff] %vm1817, %v1656
  %1846 = vst.msk [vmem:[%s3 + $0xe0] sm:$0xff] %vm1817, %v1658
  %1847 = vst.msk [vmem:[%s3 + $0xe8] sm:$0xff] %vm1817, %v1660
  %1848 = vst.msk [vmem:[%s3 + $0xf0] sm:$0xff] %vm1817, %v1662
  %1849 = vst.msk [vmem:[%s3 + $0xf8] sm:$0xff] %vm1817, %v1664
  %1850 = vst.msk [vmem:[%s3 + $0x100] sm:$0xff] %vm1817, %v1666
  %1851 = vst.msk [vmem:[%s3 + $0x108] sm:$0xff] %vm1817, %v1668
  %1852 = vst.msk [vmem:[%s3 + $0x110] sm:$0xff] %vm1817, %v1670
  %1853 = vst.msk [vmem:[%s3 + $0x118] sm:$0xff] %vm1817, %v1672
  %1854 = vst.msk [vmem:[%s3 + $0x120] sm:$0xff] %vm1817, %v1674
  %1855 = vst.msk [vmem:[%s3 + $0x128] sm:$0xff] %vm1817, %v1676
  %1856 = vst.msk [vmem:[%s3 + $0x130] sm:$0xff] %vm1817, %v1678
  %1857 = vst.msk [vmem:[%s3 + $0x138] sm:$0xff] %vm1817, %v1680
  %1858 = vst.msk [vmem:[%s3 + $0x140] sm:$0xff] %vm1817, %v1682
  %1859 = vst.msk [vmem:[%s3 + $0x148] sm:$0xff] %vm1817, %v1684
  %1860 = vst.msk [vmem:[%s3 + $0x150] sm:$0xff] %vm1817, %v1686
  %1861 = vst.msk [vmem:[%s3 + $0x158] sm:$0xff] %vm1817, %v1688
  %1862 = vst.msk [vmem:[%s3 + $0x160] sm:$0xff] %vm1817, %v1690
  %1863 = vst.msk [vmem:[%s3 + $0x168] sm:$0xff] %vm1817, %v1692
  %1864 = vst.msk [vmem:[%s3 + $0x170] sm:$0xff] %vm1817, %v1694
  %1865 = vst.msk [vmem:[%s3 + $0x178] sm:$0xff] %vm1817, %v1696
  %1866 = vst.msk [vmem:[%s3 + $0x180] sm:$0xff] %vm1817, %v1698
  %1867 = vst.msk [vmem:[%s3 + $0x188] sm:$0xff] %vm1817, %v1700
  %1868 = vst.msk [vmem:[%s3 + $0x190] sm:$0xff] %vm1817, %v1702
  %1869 = vst.msk [vmem:[%s3 + $0x198] sm:$0xff] %vm1817, %v1704
  %1870 = vst.msk [vmem:[%s3 + $0x1a0] sm:$0xff] %vm1817, %v1706
  %1871 = vst.msk [vmem:[%s3 + $0x1a8] sm:$0xff] %vm1817, %v1708
  %1872 = vst.msk [vmem:[%s3 + $0x1b0] sm:$0xff] %vm1817, %v1710
  %1873 = vst.msk [vmem:[%s3 + $0x1b8] sm:$0xff] %vm1817, %v1712
  %1874 = vst.msk [vmem:[%s3 + $0x1c0] sm:$0xff] %vm1817, %v1714
  %1875 = vst.msk [vmem:[%s3 + $0x1c8] sm:$0xff] %vm1817, %v1716
  %1876 = vst.msk [vmem:[%s3 + $0x1d0] sm:$0xff] %vm1817, %v1718
  %1877 = vst.msk [vmem:[%s3 + $0x1d8] sm:$0xff] %vm1817, %v1720
  %1878 = vst.msk [vmem:[%s3 + $0x1e0] sm:$0xff] %vm1817, %v1722
  %1879 = vst.msk [vmem:[%s3 + $0x1e8] sm:$0xff] %vm1817, %v1724
  %1880 = vst.msk [vmem:[%s3 + $0x1f0] sm:$0xff] %vm1817, %v1726
  %1881 = vst.msk [vmem:[%s3 + $0x1f8] sm:$0xff] %vm1817, %v1728
  %1882 = vst.msk [vmem:[%s3 + $0x200] sm:$0xff] %vm1817, %v1730
  %1883 = vst.msk [vmem:[%s3 + $0x208] sm:$0xff] %vm1817, %v1732
  %1884 = vst.msk [vmem:[%s3 + $0x210] sm:$0xff] %vm1817, %v1734
  %1885 = vst.msk [vmem:[%s3 + $0x218] sm:$0xff] %vm1817, %v1736
  %1886 = vst.msk [vmem:[%s3 + $0x220] sm:$0xff] %vm1817, %v1738
  %1887 = vst.msk [vmem:[%s3 + $0x228] sm:$0xff] %vm1817, %v1740
  %1888 = vst.msk [vmem:[%s3 + $0x230] sm:$0xff] %vm1817, %v1742
  %1889 = vst.msk [vmem:[%s3 + $0x238] sm:$0xff] %vm1817, %v1744
  %1890 = vst.msk [vmem:[%s3 + $0x240] sm:$0xff] %vm1817, %v1746
  %1891 = vst.msk [vmem:[%s3 + $0x248] sm:$0xff] %vm1817, %v1748
  %1892 = vst.msk [vmem:[%s3 + $0x250] sm:$0xff] %vm1817, %v1750
  %1893 = vst.msk [vmem:[%s3 + $0x258] sm:$0xff] %vm1817, %v1752
  %1894 = vst.msk [vmem:[%s3 + $0x260] sm:$0xff] %vm1817, %v1754
  %1895 = vst.msk [vmem:[%s3 + $0x268] sm:$0xff] %vm1817, %v1756
  %1896 = vst.msk [vmem:[%s3 + $0x270] sm:$0xff] %vm1817, %v1758
  %1897 = vst.msk [vmem:[%s3 + $0x278] sm:$0xff] %vm1817, %v1760
  %1898 = vst.msk [vmem:[%s3 + $0x280] sm:$0xff] %vm1817, %v1762
  %1899 = vst.msk [vmem:[%s3 + $0x288] sm:$0xff] %vm1817, %v1764
  %1900 = vst.msk [vmem:[%s3 + $0x290] sm:$0xff] %vm1817, %v1766
  %1901 = vst.msk [vmem:[%s3 + $0x298] sm:$0xff] %vm1817, %v1768
  %1902 = vst.msk [vmem:[%s3 + $0x2a0] sm:$0xff] %vm1817, %v1770
  %1903 = vst.msk [vmem:[%s3 + $0x2a8] sm:$0xff] %vm1817, %v1772
  %1904 = vst.msk [vmem:[%s3 + $0x2b0] sm:$0xff] %vm1817, %v1774
  %1905 = vst.msk [vmem:[%s3 + $0x2b8] sm:$0xff] %vm1817, %v1776
  %1906 = vst.msk [vmem:[%s3 + $0x2c0] sm:$0xff] %vm1817, %v1778
  %1907 = vst.msk [vmem:[%s3 + $0x2c8] sm:$0xff] %vm1817, %v1780
  %1908 = vst.msk [vmem:[%s3 + $0x2d0] sm:$0xff] %vm1817, %v1782
  %1909 = vst.msk [vmem:[%s3 + $0x2d8] sm:$0xff] %vm1817, %v1784
  %1910 = vst.msk [vmem:[%s3 + $0x2e0] sm:$0xff] %vm1817, %v1786
  %1911 = vst.msk [vmem:[%s3 + $0x2e8] sm:$0xff] %vm1817, %v1788
  %1912 = vst.msk [vmem:[%s3 + $0x2f0] sm:$0xff] %vm1817, %v1790
  %1913 = vst.msk [vmem:[%s3 + $0x2f8] sm:$0xff] %vm1817, %v1792
  %1914 = vst.msk [vmem:[%s3 + $0x300] sm:$0xff] %vm1817, %v1794
  %1915 = vst.msk [vmem:[%s3 + $0x308] sm:$0xff] %vm1817, %v1796
  %1916 = vst.msk [vmem:[%s3 + $0x310] sm:$0xff] %vm1817, %v1798
  %1917 = vst.msk [vmem:[%s3 + $0x318] sm:$0xff] %vm1817, %v1800
  %1918 = vst.msk [vmem:[%s3 + $0x320] sm:$0xff] %vm1817, %v1802
  %1919 = vst.msk [vmem:[%s3 + $0x328] sm:$0xff] %vm1817, %v1804
  %1920 = vst.msk [vmem:[%s3 + $0x330] sm:$0xff] %vm1817, %v1806
  %1921 = vst.msk [vmem:[%s3 + $0x338] sm:$0xff] %vm1817, %v1808
  %1922 = vst.msk [vmem:[%s3 + $0x340] sm:$0xff] %vm1817, %v1810
  %1923 = vst.msk [vmem:[%s3 + $0x348] sm:$0xff] %vm1817, %v1812
  %1924 = vst.msk [vmem:[%s3 + $0x350] sm:$0xff] %vm1817, %v1814
  %1925 = vst.msk [vmem:[%s3 + $0x358] sm:$0xff] %vm1817, %v1816
  // Predicated region
  $region14: #{conv1x1_sigmoid.1} parent=0 // pred_check
    _
  $region15: #{conv1x1_sigmoid.1} parent=0 // pred_check_branch
    %1927 = sbr.rel (0) target = $region17
  $region16: #{conv1x1_sigmoid.1} parent=0 // pred_region
    _
  $region17: #{conv1x1_sigmoid.1} parent=0 // pred_fallthru
    _
  // Predicated region
  $region18: #{conv1x1_sigmoid.1} parent=0 // pred_check
    _
  $region19: #{conv1x1_sigmoid.1} parent=0 // pred_check_branch
    %1929 = sbr.rel (0) target = $region21
  $region20: #{conv1x1_sigmoid.1} parent=0 // pred_region
    _
  $region21: #{conv1x1_sigmoid.1} parent=0 // pred_fallthru
    _

</llo_original>
